<compile_context>
chip_gen: v5e
topology: v5e:2x2
jax: 0.10.0
libtpu: 0.0.40
codegen_flags: <defaults>
</compile_context>

<pallas_src>
import functools

import jax
import jax.numpy as jnp
from jax import lax
from jax.experimental import pallas as pl
from jax.experimental.pallas import tpu as pltpu


def _sa_kernel(w_ref, x_ref, o_ref, pk_ref, sh_ref, *,
               C, H, W, K, P, Nb, HP, WSPAN, LNW):
    # x_ref block: (Nb, C, H, W).  pk_ref: (2*HP, LNW + K - 1) zero-padded,
    # lane-packed planes.  sh_ref: (2, K, HP, LNW) lane-shifted copies.

    # ---- 1. fused channel mean + max: one pass over C ------------------
    x0 = x_ref[:, 0].astype(jnp.float32)            # (Nb, H, W)
    run_sum = x0
    run_max = x0
    for c in range(1, C):
        xc = x_ref[:, c].astype(jnp.float32)
        run_sum = run_sum + xc
        run_max = jnp.maximum(run_max, xc)
    planes = (run_sum * (1.0 / C), run_max)         # input order: [avg, max]

    # ---- 2. pack all Nb images side-by-side along lanes ----------------
    # Zero-fill gives the conv's "same" zero padding (P rows/cols per image).
    pk_ref[...] = jnp.zeros_like(pk_ref)
    for c in range(2):
        row0 = c * HP + P
        for b in range(Nb):
            col0 = b * WSPAN + P
            pk_ref[row0:row0 + H, col0:col0 + W] = planes[c][b]

    # ---- 3. precompute the K lane-shifted copies per plane -------------
    # (the only lane-misaligned accesses; 2*K of them, reused across all ky)
    for c in range(2):
        for kx in range(K):
            sh_ref[c, kx] = pk_ref[c * HP:(c + 1) * HP, kx:kx + LNW]

    # ---- 4. hoist the 2*K*K weight scalars out of the MAC loop ---------
    wts = [w_ref[t] for t in range(2 * K * K)]

    # ---- 5. 2*K*K-tap MAC; per tap only a sublane-offset VMEM load -----
    acc = jnp.zeros((H, LNW), jnp.float32)
    for c in range(2):
        for ky in range(K):
            for kx in range(K):
                tap = sh_ref[c, kx, ky:ky + H, :]   # (H, LNW), cheap addressing
                acc = acc + wts[c * K * K + ky * K + kx] * tap

    # ---- 6. sigmoid: exp on the EUP, reciprocal for the divide ---------
    sig = pl.reciprocal(1.0 + jnp.exp(-acc), approx=False)
    o_ref[0] = sig.astype(o_ref.dtype)


def spatial_attention(x, w, *, max_batch_per_step=8):
    """x: (N, C, H, W) float32.  w: (1, 2, K, K) conv weight (OIHW), no bias."""
    N, C, H, W = x.shape
    K = w.shape[-1]
    P = (K - 1) // 2

    Nb = min(N, max_batch_per_step)          # images packed per grid step
    G = (N + Nb - 1) // Nb
    Npad = G * Nb
    if Npad != N:
        x = jnp.pad(x, ((0, Npad - N), (0, 0), (0, 0), (0, 0)))

    HP = H + 2 * P                           # padded plane height
    WSPAN = W + 2 * P                        # per-image lane span (incl. pad)
    LNW = Nb * WSPAN                         # packed working lane width
    LNP = LNW + (K - 1)                      # + slack for the kx lane shifts

    w_flat = w.reshape(-1).astype(jnp.float32)   # 2*K*K scalars -> SMEM

    kernel = functools.partial(
        _sa_kernel, C=C, H=H, W=W, K=K, P=P, Nb=Nb,
        HP=HP, WSPAN=WSPAN, LNW=LNW)

    cost = pl.CostEstimate(
        flops=int(Npad * H * W * (2 * C + 4 * K * K)),
        transcendentals=int(Npad * H * W),
        bytes_accessed=int(Npad * C * H * W * 4 + Npad * H * W * 4
                           + w_flat.size * 4),
    )

    out_k = pl.pallas_call(
        kernel,
        out_shape=jax.ShapeDtypeStruct((G, H, LNW), x.dtype),
        grid_spec=pltpu.PrefetchScalarGridSpec(
            num_scalar_prefetch=0,
            grid=(G,),
            in_specs=[
                pl.BlockSpec(memory_space=pltpu.MemorySpace.SMEM),        # weights
                pl.BlockSpec((Nb, C, H, W), lambda g: (g, 0, 0, 0)),      # x slab
            ],
            out_specs=pl.BlockSpec((1, H, LNW), lambda g: (g, 0, 0)),
            scratch_shapes=[
                pltpu.VMEM((2 * HP, LNP), jnp.float32),   # packed padded planes
                pltpu.VMEM((2, K, HP, LNW), jnp.float32),  # lane-shifted copies
            ],
        ),
        compiler_params=pltpu.CompilerParams(
            dimension_semantics=("parallel",)),   # batch steps shard across TCs
        cost_estimate=cost,
    )(w_flat, x)

    # Layout plumbing back to NCHW (pure metadata / tiny XLA ops).
    out = out_k.reshape(G, H, Nb, WSPAN)[..., :W]        # drop per-image slack
    out = out.transpose(0, 2, 1, 3).reshape(Npad, 1, H, W)[:N]
    return out


def spatial_attention_ref(x, w):
    """Pure-JAX reference matching the PyTorch forward exactly."""
    avg = jnp.mean(x, axis=1, keepdims=True)
    mx = jnp.max(x, axis=1, keepdims=True)
    xc = jnp.concatenate([avg, mx], axis=1)
    pad = (w.shape[-1] - 1) // 2
    y = lax.conv_general_dilated(
        xc, w, window_strides=(1, 1),
        padding=[(pad, pad), (pad, pad)],
        dimension_numbers=("NCHW", "OIHW", "NCHW"))
    return jax.nn.sigmoid(y)


if __name__ == "__main__":
    key = jax.random.PRNGKey(0)
    kx, kw = jax.random.split(key)

    N, C, H, W = 2, 4, 16, 16
    K = 7
    x = jax.random.normal(kx, (N, C, H, W), dtype=jnp.float32)
    # Deterministic conv weight init (Conv2d(2, 1, 7, bias=False) -> (1,2,7,7)).
    fan_in = 2 * K * K
    w = jax.random.uniform(kw, (1, 2, K, K), dtype=jnp.float32,
                           minval=-1.0, maxval=1.0) * (1.0 / fan_in) ** 0.5

    out = spatial_attention(x, w)
    out = jax.block_until_ready(out)

    ref = spatial_attention_ref(x, w)
    assert out.shape == (N, 1, H, W), out.shape
    err = float(jnp.max(jnp.abs(out - ref)))
    assert jnp.allclose(out, ref, atol=1e-5, rtol=1e-5), err

    print("KERNEL_OK")
</pallas_src>

<mosaic_0001>
module attributes {stable_mosaic.version = 11 : i64} {
  func.func @_sa_kernel(%arg0: i32, %arg1: memref<98xf32, #tpu.memory_space<smem>>, %arg2: memref<2x4x16x16xf32, #tpu.memory_space<vmem>>, %arg3: memref<1x16x44xf32, #tpu.memory_space<vmem>>, %arg4: memref<44x50xf32, #tpu.memory_space<vmem>>, %arg5: memref<2x7x22x44xf32, #tpu.memory_space<vmem>>) attributes {dimension_semantics = [#tpu.dimension_semantics<parallel>], iteration_bounds = array<i64: 1>, scalar_prefetch = 0 : i64, scratch_operands = 2 : i64, tpu.core_type = #tpu.core_type<tc>, window_params = [{transform_indices = @transform_0, window_bounds = array<i64: 98>}, {transform_indices = @transform_1, window_bounds = array<i64: 2, 4, 16, 16>}, {transform_indices = @transform_2, window_bounds = array<i64: 1, 16, 44>}]} {
    %c0 = arith.constant 0 : index
    %c0_0 = arith.constant 0 : index
    %c0_1 = arith.constant 0 : index
    %c0_2 = arith.constant 0 : index
    %0 = vector.load %arg2[%c0, %c0_0, %c0_1, %c0_2] : memref<2x4x16x16xf32, #tpu.memory_space<vmem>>, vector<2x1x16x16xf32>
    %1 = vector.shape_cast %0 : vector<2x1x16x16xf32> to vector<2x16x16xf32>
    %c0_3 = arith.constant 0 : index
    %c1 = arith.constant 1 : index
    %c0_4 = arith.constant 0 : index
    %c0_5 = arith.constant 0 : index
    %2 = vector.load %arg2[%c0_3, %c1, %c0_4, %c0_5] : memref<2x4x16x16xf32, #tpu.memory_space<vmem>>, vector<2x1x16x16xf32>
    %3 = vector.shape_cast %2 : vector<2x1x16x16xf32> to vector<2x16x16xf32>
    %4 = arith.addf %1, %3 : vector<2x16x16xf32>
    %5 = arith.maximumf %1, %3 : vector<2x16x16xf32>
    %c0_6 = arith.constant 0 : index
    %c2 = arith.constant 2 : index
    %c0_7 = arith.constant 0 : index
    %c0_8 = arith.constant 0 : index
    %6 = vector.load %arg2[%c0_6, %c2, %c0_7, %c0_8] : memref<2x4x16x16xf32, #tpu.memory_space<vmem>>, vector<2x1x16x16xf32>
    %7 = vector.shape_cast %6 : vector<2x1x16x16xf32> to vector<2x16x16xf32>
    %8 = arith.addf %4, %7 : vector<2x16x16xf32>
    %9 = arith.maximumf %5, %7 : vector<2x16x16xf32>
    %c0_9 = arith.constant 0 : index
    %c3 = arith.constant 3 : index
    %c0_10 = arith.constant 0 : index
    %c0_11 = arith.constant 0 : index
    %10 = vector.load %arg2[%c0_9, %c3, %c0_10, %c0_11] : memref<2x4x16x16xf32, #tpu.memory_space<vmem>>, vector<2x1x16x16xf32>
    %11 = vector.shape_cast %10 : vector<2x1x16x16xf32> to vector<2x16x16xf32>
    %12 = arith.addf %8, %11 : vector<2x16x16xf32>
    %13 = arith.maximumf %9, %11 : vector<2x16x16xf32>
    %cst = arith.constant 2.500000e-01 : f32
    %14 = vector.broadcast %cst : f32 to vector<2x16x16xf32>
    %15 = arith.mulf %12, %14 : vector<2x16x16xf32>
    %cst_12 = arith.constant 0.000000e+00 : f32
    %16 = vector.broadcast %cst_12 : f32 to vector<44x50xf32>
    %c0_13 = arith.constant 0 : index
    %c0_14 = arith.constant 0 : index
    %17 = vector.load %arg4[%c0_13, %c0_14] : memref<44x50xf32, #tpu.memory_space<vmem>>, vector<44x50xf32>
    tpu.vector_store %arg4[%c0_13, %c0_14], %16 {strides = array<i32>} : memref<44x50xf32, #tpu.memory_space<vmem>>, vector<44x50xf32>,
    %18 = vector.extract_strided_slice %15 {offsets = [0, 0, 0], sizes = [1, 16, 16], strides = [1, 1, 1]} : vector<2x16x16xf32> to vector<1x16x16xf32>
    %19 = vector.shape_cast %18 : vector<1x16x16xf32> to vector<16x16xf32>
    %c3_15 = arith.constant 3 : index
    %c3_16 = arith.constant 3 : index
    %20 = vector.load %arg4[%c3_15, %c3_16] : memref<44x50xf32, #tpu.memory_space<vmem>>, vector<16x16xf32>
    tpu.vector_store %arg4[%c3_15, %c3_16], %19 {strides = array<i32>} : memref<44x50xf32, #tpu.memory_space<vmem>>, vector<16x16xf32>,
    %21 = vector.extract_strided_slice %15 {offsets = [1, 0, 0], sizes = [1, 16, 16], strides = [1, 1, 1]} : vector<2x16x16xf32> to vector<1x16x16xf32>
    %22 = vector.shape_cast %21 : vector<1x16x16xf32> to vector<16x16xf32>
    %c3_17 = arith.constant 3 : index
    %c25 = arith.constant 25 : index
    %23 = vector.load %arg4[%c3_17, %c25] : memref<44x50xf32, #tpu.memory_space<vmem>>, vector<16x16xf32>
    tpu.vector_store %arg4[%c3_17, %c25], %22 {strides = array<i32>} : memref<44x50xf32, #tpu.memory_space<vmem>>, vector<16x16xf32>,
    %24 = vector.extract_strided_slice %13 {offsets = [0, 0, 0], sizes = [1, 16, 16], strides = [1, 1, 1]} : vector<2x16x16xf32> to vector<1x16x16xf32>
    %25 = vector.shape_cast %24 : vector<1x16x16xf32> to vector<16x16xf32>
    %c25_18 = arith.constant 25 : index
    %c3_19 = arith.constant 3 : index
    %26 = vector.load %arg4[%c25_18, %c3_19] : memref<44x50xf32, #tpu.memory_space<vmem>>, vector<16x16xf32>
    tpu.vector_store %arg4[%c25_18, %c3_19], %25 {strides = array<i32>} : memref<44x50xf32, #tpu.memory_space<vmem>>, vector<16x16xf32>,
    %27 = vector.extract_strided_slice %13 {offsets = [1, 0, 0], sizes = [1, 16, 16], strides = [1, 1, 1]} : vector<2x16x16xf32> to vector<1x16x16xf32>
    %28 = vector.shape_cast %27 : vector<1x16x16xf32> to vector<16x16xf32>
    %c25_20 = arith.constant 25 : index
    %c25_21 = arith.constant 25 : index
    %29 = vector.load %arg4[%c25_20, %c25_21] : memref<44x50xf32, #tpu.memory_space<vmem>>, vector<16x16xf32>
    tpu.vector_store %arg4[%c25_20, %c25_21], %28 {strides = array<i32>} : memref<44x50xf32, #tpu.memory_space<vmem>>, vector<16x16xf32>,
    %c0_22 = arith.constant 0 : index
    %c0_23 = arith.constant 0 : index
    %30 = vector.load %arg4[%c0_22, %c0_23] : memref<44x50xf32, #tpu.memory_space<vmem>>, vector<22x44xf32>
    %c0_24 = arith.constant 0 : index
    %c0_25 = arith.constant 0 : index
    %c0_26 = arith.constant 0 : index
    %c0_27 = arith.constant 0 : index
    %31 = vector.load %arg5[%c0_24, %c0_25, %c0_26, %c0_27] : memref<2x7x22x44xf32, #tpu.memory_space<vmem>>, vector<1x1x22x44xf32>
    %32 = vector.shape_cast %31 : vector<1x1x22x44xf32> to vector<22x44xf32>
    %33 = vector.shape_cast %30 : vector<22x44xf32> to vector<1x1x22x44xf32>
    tpu.vector_store %arg5[%c0_24, %c0_25, %c0_26, %c0_27], %33 {strides = array<i32>} : memref<2x7x22x44xf32, #tpu.memory_space<vmem>>, vector<1x1x22x44xf32>,
    %c0_28 = arith.constant 0 : index
    %c1_29 = arith.constant 1 : index
    %34 = vector.load %arg4[%c0_28, %c1_29] : memref<44x50xf32, #tpu.memory_space<vmem>>, vector<22x44xf32>
    %c0_30 = arith.constant 0 : index
    %c1_31 = arith.constant 1 : index
    %c0_32 = arith.constant 0 : index
    %c0_33 = arith.constant 0 : index
    %35 = vector.load %arg5[%c0_30, %c1_31, %c0_32, %c0_33] : memref<2x7x22x44xf32, #tpu.memory_space<vmem>>, vector<1x1x22x44xf32>
    %36 = vector.shape_cast %35 : vector<1x1x22x44xf32> to vector<22x44xf32>
    %37 = vector.shape_cast %34 : vector<22x44xf32> to vector<1x1x22x44xf32>
    tpu.vector_store %arg5[%c0_30, %c1_31, %c0_32, %c0_33], %37 {strides = array<i32>} : memref<2x7x22x44xf32, #tpu.memory_space<vmem>>, vector<1x1x22x44xf32>,
    %c0_34 = arith.constant 0 : index
    %c2_35 = arith.constant 2 : index
    %38 = vector.load %arg4[%c0_34, %c2_35] : memref<44x50xf32, #tpu.memory_space<vmem>>, vector<22x44xf32>
    %c0_36 = arith.constant 0 : index
    %c2_37 = arith.constant 2 : index
    %c0_38 = arith.constant 0 : index
    %c0_39 = arith.constant 0 : index
    %39 = vector.load %arg5[%c0_36, %c2_37, %c0_38, %c0_39] : memref<2x7x22x44xf32, #tpu.memory_space<vmem>>, vector<1x1x22x44xf32>
    %40 = vector.shape_cast %39 : vector<1x1x22x44xf32> to vector<22x44xf32>
    %41 = vector.shape_cast %38 : vector<22x44xf32> to vector<1x1x22x44xf32>
    tpu.vector_store %arg5[%c0_36, %c2_37, %c0_38, %c0_39], %41 {strides = array<i32>} : memref<2x7x22x44xf32, #tpu.memory_space<vmem>>, vector<1x1x22x44xf32>,
    %c0_40 = arith.constant 0 : index
    %c3_41 = arith.constant 3 : index
    %42 = vector.load %arg4[%c0_40, %c3_41] : memref<44x50xf32, #tpu.memory_space<vmem>>, vector<22x44xf32>
    %c0_42 = arith.constant 0 : index
    %c3_43 = arith.constant 3 : index
    %c0_44 = arith.constant 0 : index
    %c0_45 = arith.constant 0 : index
    %43 = vector.load %arg5[%c0_42, %c3_43, %c0_44, %c0_45] : memref<2x7x22x44xf32, #tpu.memory_space<vmem>>, vector<1x1x22x44xf32>
    %44 = vector.shape_cast %43 : vector<1x1x22x44xf32> to vector<22x44xf32>
    %45 = vector.shape_cast %42 : vector<22x44xf32> to vector<1x1x22x44xf32>
    tpu.vector_store %arg5[%c0_42, %c3_43, %c0_44, %c0_45], %45 {strides = array<i32>} : memref<2x7x22x44xf32, #tpu.memory_space<vmem>>, vector<1x1x22x44xf32>,
    %c0_46 = arith.constant 0 : index
    %c4 = arith.constant 4 : index
    %46 = vector.load %arg4[%c0_46, %c4] : memref<44x50xf32, #tpu.memory_space<vmem>>, vector<22x44xf32>
    %c0_47 = arith.constant 0 : index
    %c4_48 = arith.constant 4 : index
    %c0_49 = arith.constant 0 : index
    %c0_50 = arith.constant 0 : index
    %47 = vector.load %arg5[%c0_47, %c4_48, %c0_49, %c0_50] : memref<2x7x22x44xf32, #tpu.memory_space<vmem>>, vector<1x1x22x44xf32>
    %48 = vector.shape_cast %47 : vector<1x1x22x44xf32> to vector<22x44xf32>
    %49 = vector.shape_cast %46 : vector<22x44xf32> to vector<1x1x22x44xf32>
    tpu.vector_store %arg5[%c0_47, %c4_48, %c0_49, %c0_50], %49 {strides = array<i32>} : memref<2x7x22x44xf32, #tpu.memory_space<vmem>>, vector<1x1x22x44xf32>,
    %c0_51 = arith.constant 0 : index
    %c5 = arith.constant 5 : index
    %50 = vector.load %arg4[%c0_51, %c5] : memref<44x50xf32, #tpu.memory_space<vmem>>, vector<22x44xf32>
    %c0_52 = arith.constant 0 : index
    %c5_53 = arith.constant 5 : index
    %c0_54 = arith.constant 0 : index
    %c0_55 = arith.constant 0 : index
    %51 = vector.load %arg5[%c0_52, %c5_53, %c0_54, %c0_55] : memref<2x7x22x44xf32, #tpu.memory_space<vmem>>, vector<1x1x22x44xf32>
    %52 = vector.shape_cast %51 : vector<1x1x22x44xf32> to vector<22x44xf32>
    %53 = vector.shape_cast %50 : vector<22x44xf32> to vector<1x1x22x44xf32>
    tpu.vector_store %arg5[%c0_52, %c5_53, %c0_54, %c0_55], %53 {strides = array<i32>} : memref<2x7x22x44xf32, #tpu.memory_space<vmem>>, vector<1x1x22x44xf32>,
    %c0_56 = arith.constant 0 : index
    %c6 = arith.constant 6 : index
    %54 = vector.load %arg4[%c0_56, %c6] : memref<44x50xf32, #tpu.memory_space<vmem>>, vector<22x44xf32>
    %c0_57 = arith.constant 0 : index
    %c6_58 = arith.constant 6 : index
    %c0_59 = arith.constant 0 : index
    %c0_60 = arith.constant 0 : index
    %55 = vector.load %arg5[%c0_57, %c6_58, %c0_59, %c0_60] : memref<2x7x22x44xf32, #tpu.memory_space<vmem>>, vector<1x1x22x44xf32>
    %56 = vector.shape_cast %55 : vector<1x1x22x44xf32> to vector<22x44xf32>
    %57 = vector.shape_cast %54 : vector<22x44xf32> to vector<1x1x22x44xf32>
    tpu.vector_store %arg5[%c0_57, %c6_58, %c0_59, %c0_60], %57 {strides = array<i32>} : memref<2x7x22x44xf32, #tpu.memory_space<vmem>>, vector<1x1x22x44xf32>,
    %c22 = arith.constant 22 : index
    %c0_61 = arith.constant 0 : index
    %58 = vector.load %arg4[%c22, %c0_61] : memref<44x50xf32, #tpu.memory_space<vmem>>, vector<22x44xf32>
    %c1_62 = arith.constant 1 : index
    %c0_63 = arith.constant 0 : index
    %c0_64 = arith.constant 0 : index
    %c0_65 = arith.constant 0 : index
    %59 = vector.load %arg5[%c1_62, %c0_63, %c0_64, %c0_65] : memref<2x7x22x44xf32, #tpu.memory_space<vmem>>, vector<1x1x22x44xf32>
    %60 = vector.shape_cast %59 : vector<1x1x22x44xf32> to vector<22x44xf32>
    %61 = vector.shape_cast %58 : vector<22x44xf32> to vector<1x1x22x44xf32>
    tpu.vector_store %arg5[%c1_62, %c0_63, %c0_64, %c0_65], %61 {strides = array<i32>} : memref<2x7x22x44xf32, #tpu.memory_space<vmem>>, vector<1x1x22x44xf32>,
    %c22_66 = arith.constant 22 : index
    %c1_67 = arith.constant 1 : index
    %62 = vector.load %arg4[%c22_66, %c1_67] : memref<44x50xf32, #tpu.memory_space<vmem>>, vector<22x44xf32>
    %c1_68 = arith.constant 1 : index
    %c1_69 = arith.constant 1 : index
    %c0_70 = arith.constant 0 : index
    %c0_71 = arith.constant 0 : index
    %63 = vector.load %arg5[%c1_68, %c1_69, %c0_70, %c0_71] : memref<2x7x22x44xf32, #tpu.memory_space<vmem>>, vector<1x1x22x44xf32>
    %64 = vector.shape_cast %63 : vector<1x1x22x44xf32> to vector<22x44xf32>
    %65 = vector.shape_cast %62 : vector<22x44xf32> to vector<1x1x22x44xf32>
    tpu.vector_store %arg5[%c1_68, %c1_69, %c0_70, %c0_71], %65 {strides = array<i32>} : memref<2x7x22x44xf32, #tpu.memory_space<vmem>>, vector<1x1x22x44xf32>,
    %c22_72 = arith.constant 22 : index
    %c2_73 = arith.constant 2 : index
    %66 = vector.load %arg4[%c22_72, %c2_73] : memref<44x50xf32, #tpu.memory_space<vmem>>, vector<22x44xf32>
    %c1_74 = arith.constant 1 : index
    %c2_75 = arith.constant 2 : index
    %c0_76 = arith.constant 0 : index
    %c0_77 = arith.constant 0 : index
    %67 = vector.load %arg5[%c1_74, %c2_75, %c0_76, %c0_77] : memref<2x7x22x44xf32, #tpu.memory_space<vmem>>, vector<1x1x22x44xf32>
    %68 = vector.shape_cast %67 : vector<1x1x22x44xf32> to vector<22x44xf32>
    %69 = vector.shape_cast %66 : vector<22x44xf32> to vector<1x1x22x44xf32>
    tpu.vector_store %arg5[%c1_74, %c2_75, %c0_76, %c0_77], %69 {strides = array<i32>} : memref<2x7x22x44xf32, #tpu.memory_space<vmem>>, vector<1x1x22x44xf32>,
    %c22_78 = arith.constant 22 : index
    %c3_79 = arith.constant 3 : index
    %70 = vector.load %arg4[%c22_78, %c3_79] : memref<44x50xf32, #tpu.memory_space<vmem>>, vector<22x44xf32>
    %c1_80 = arith.constant 1 : index
    %c3_81 = arith.constant 3 : index
    %c0_82 = arith.constant 0 : index
    %c0_83 = arith.constant 0 : index
    %71 = vector.load %arg5[%c1_80, %c3_81, %c0_82, %c0_83] : memref<2x7x22x44xf32, #tpu.memory_space<vmem>>, vector<1x1x22x44xf32>
    %72 = vector.shape_cast %71 : vector<1x1x22x44xf32> to vector<22x44xf32>
    %73 = vector.shape_cast %70 : vector<22x44xf32> to vector<1x1x22x44xf32>
    tpu.vector_store %arg5[%c1_80, %c3_81, %c0_82, %c0_83], %73 {strides = array<i32>} : memref<2x7x22x44xf32, #tpu.memory_space<vmem>>, vector<1x1x22x44xf32>,
    %c22_84 = arith.constant 22 : index
    %c4_85 = arith.constant 4 : index
    %74 = vector.load %arg4[%c22_84, %c4_85] : memref<44x50xf32, #tpu.memory_space<vmem>>, vector<22x44xf32>
    %c1_86 = arith.constant 1 : index
    %c4_87 = arith.constant 4 : index
    %c0_88 = arith.constant 0 : index
    %c0_89 = arith.constant 0 : index
    %75 = vector.load %arg5[%c1_86, %c4_87, %c0_88, %c0_89] : memref<2x7x22x44xf32, #tpu.memory_space<vmem>>, vector<1x1x22x44xf32>
    %76 = vector.shape_cast %75 : vector<1x1x22x44xf32> to vector<22x44xf32>
    %77 = vector.shape_cast %74 : vector<22x44xf32> to vector<1x1x22x44xf32>
    tpu.vector_store %arg5[%c1_86, %c4_87, %c0_88, %c0_89], %77 {strides = array<i32>} : memref<2x7x22x44xf32, #tpu.memory_space<vmem>>, vector<1x1x22x44xf32>,
    %c22_90 = arith.constant 22 : index
    %c5_91 = arith.constant 5 : index
    %78 = vector.load %arg4[%c22_90, %c5_91] : memref<44x50xf32, #tpu.memory_space<vmem>>, vector<22x44xf32>
    %c1_92 = arith.constant 1 : index
    %c5_93 = arith.constant 5 : index
    %c0_94 = arith.constant 0 : index
    %c0_95 = arith.constant 0 : index
    %79 = vector.load %arg5[%c1_92, %c5_93, %c0_94, %c0_95] : memref<2x7x22x44xf32, #tpu.memory_space<vmem>>, vector<1x1x22x44xf32>
    %80 = vector.shape_cast %79 : vector<1x1x22x44xf32> to vector<22x44xf32>
    %81 = vector.shape_cast %78 : vector<22x44xf32> to vector<1x1x22x44xf32>
    tpu.vector_store %arg5[%c1_92, %c5_93, %c0_94, %c0_95], %81 {strides = array<i32>} : memref<2x7x22x44xf32, #tpu.memory_space<vmem>>, vector<1x1x22x44xf32>,
    %c22_96 = arith.constant 22 : index
    %c6_97 = arith.constant 6 : index
    %82 = vector.load %arg4[%c22_96, %c6_97] : memref<44x50xf32, #tpu.memory_space<vmem>>, vector<22x44xf32>
    %c1_98 = arith.constant 1 : index
    %c6_99 = arith.constant 6 : index
    %c0_100 = arith.constant 0 : index
    %c0_101 = arith.constant 0 : index
    %83 = vector.load %arg5[%c1_98, %c6_99, %c0_100, %c0_101] : memref<2x7x22x44xf32, #tpu.memory_space<vmem>>, vector<1x1x22x44xf32>
    %84 = vector.shape_cast %83 : vector<1x1x22x44xf32> to vector<22x44xf32>
    %85 = vector.shape_cast %82 : vector<22x44xf32> to vector<1x1x22x44xf32>
    tpu.vector_store %arg5[%c1_98, %c6_99, %c0_100, %c0_101], %85 {strides = array<i32>} : memref<2x7x22x44xf32, #tpu.memory_space<vmem>>, vector<1x1x22x44xf32>,
    %c0_102 = arith.constant 0 : index
    %86 = memref.load %arg1[%c0_102] : memref<98xf32, #tpu.memory_space<smem>>
    %c1_103 = arith.constant 1 : index
    %87 = memref.load %arg1[%c1_103] : memref<98xf32, #tpu.memory_space<smem>>
    %c2_104 = arith.constant 2 : index
    %88 = memref.load %arg1[%c2_104] : memref<98xf32, #tpu.memory_space<smem>>
    %c3_105 = arith.constant 3 : index
    %89 = memref.load %arg1[%c3_105] : memref<98xf32, #tpu.memory_space<smem>>
    %c4_106 = arith.constant 4 : index
    %90 = memref.load %arg1[%c4_106] : memref<98xf32, #tpu.memory_space<smem>>
    %c5_107 = arith.constant 5 : index
    %91 = memref.load %arg1[%c5_107] : memref<98xf32, #tpu.memory_space<smem>>
    %c6_108 = arith.constant 6 : index
    %92 = memref.load %arg1[%c6_108] : memref<98xf32, #tpu.memory_space<smem>>
    %c7 = arith.constant 7 : index
    %93 = memref.load %arg1[%c7] : memref<98xf32, #tpu.memory_space<smem>>
    %c8 = arith.constant 8 : index
    %94 = memref.load %arg1[%c8] : memref<98xf32, #tpu.memory_space<smem>>
    %c9 = arith.constant 9 : index
    %95 = memref.load %arg1[%c9] : memref<98xf32, #tpu.memory_space<smem>>
    %c10 = arith.constant 10 : index
    %96 = memref.load %arg1[%c10] : memref<98xf32, #tpu.memory_space<smem>>
    %c11 = arith.constant 11 : index
    %97 = memref.load %arg1[%c11] : memref<98xf32, #tpu.memory_space<smem>>
    %c12 = arith.constant 12 : index
    %98 = memref.load %arg1[%c12] : memref<98xf32, #tpu.memory_space<smem>>
    %c13 = arith.constant 13 : index
    %99 = memref.load %arg1[%c13] : memref<98xf32, #tpu.memory_space<smem>>
    %c14 = arith.constant 14 : index
    %100 = memref.load %arg1[%c14] : memref<98xf32, #tpu.memory_space<smem>>
    %c15 = arith.constant 15 : index
    %101 = memref.load %arg1[%c15] : memref<98xf32, #tpu.memory_space<smem>>
    %c16 = arith.constant 16 : index
    %102 = memref.load %arg1[%c16] : memref<98xf32, #tpu.memory_space<smem>>
    %c17 = arith.constant 17 : index
    %103 = memref.load %arg1[%c17] : memref<98xf32, #tpu.memory_space<smem>>
    %c18 = arith.constant 18 : index
    %104 = memref.load %arg1[%c18] : memref<98xf32, #tpu.memory_space<smem>>
    %c19 = arith.constant 19 : index
    %105 = memref.load %arg1[%c19] : memref<98xf32, #tpu.memory_space<smem>>
    %c20 = arith.constant 20 : index
    %106 = memref.load %arg1[%c20] : memref<98xf32, #tpu.memory_space<smem>>
    %c21 = arith.constant 21 : index
    %107 = memref.load %arg1[%c21] : memref<98xf32, #tpu.memory_space<smem>>
    %c22_109 = arith.constant 22 : index
    %108 = memref.load %arg1[%c22_109] : memref<98xf32, #tpu.memory_space<smem>>
    %c23 = arith.constant 23 : index
    %109 = memref.load %arg1[%c23] : memref<98xf32, #tpu.memory_space<smem>>
    %c24 = arith.constant 24 : index
    %110 = memref.load %arg1[%c24] : memref<98xf32, #tpu.memory_space<smem>>
    %c25_110 = arith.constant 25 : index
    %111 = memref.load %arg1[%c25_110] : memref<98xf32, #tpu.memory_space<smem>>
    %c26 = arith.constant 26 : index
    %112 = memref.load %arg1[%c26] : memref<98xf32, #tpu.memory_space<smem>>
    %c27 = arith.constant 27 : index
    %113 = memref.load %arg1[%c27] : memref<98xf32, #tpu.memory_space<smem>>
    %c28 = arith.constant 28 : index
    %114 = memref.load %arg1[%c28] : memref<98xf32, #tpu.memory_space<smem>>
    %c29 = arith.constant 29 : index
    %115 = memref.load %arg1[%c29] : memref<98xf32, #tpu.memory_space<smem>>
    %c30 = arith.constant 30 : index
    %116 = memref.load %arg1[%c30] : memref<98xf32, #tpu.memory_space<smem>>
    %c31 = arith.constant 31 : index
    %117 = memref.load %arg1[%c31] : memref<98xf32, #tpu.memory_space<smem>>
    %c32 = arith.constant 32 : index
    %118 = memref.load %arg1[%c32] : memref<98xf32, #tpu.memory_space<smem>>
    %c33 = arith.constant 33 : index
    %119 = memref.load %arg1[%c33] : memref<98xf32, #tpu.memory_space<smem>>
    %c34 = arith.constant 34 : index
    %120 = memref.load %arg1[%c34] : memref<98xf32, #tpu.memory_space<smem>>
    %c35 = arith.constant 35 : index
    %121 = memref.load %arg1[%c35] : memref<98xf32, #tpu.memory_space<smem>>
    %c36 = arith.constant 36 : index
    %122 = memref.load %arg1[%c36] : memref<98xf32, #tpu.memory_space<smem>>
    %c37 = arith.constant 37 : index
    %123 = memref.load %arg1[%c37] : memref<98xf32, #tpu.memory_space<smem>>
    %c38 = arith.constant 38 : index
    %124 = memref.load %arg1[%c38] : memref<98xf32, #tpu.memory_space<smem>>
    %c39 = arith.constant 39 : index
    %125 = memref.load %arg1[%c39] : memref<98xf32, #tpu.memory_space<smem>>
    %c40 = arith.constant 40 : index
    %126 = memref.load %arg1[%c40] : memref<98xf32, #tpu.memory_space<smem>>
    %c41 = arith.constant 41 : index
    %127 = memref.load %arg1[%c41] : memref<98xf32, #tpu.memory_space<smem>>
    %c42 = arith.constant 42 : index
    %128 = memref.load %arg1[%c42] : memref<98xf32, #tpu.memory_space<smem>>
    %c43 = arith.constant 43 : index
    %129 = memref.load %arg1[%c43] : memref<98xf32, #tpu.memory_space<smem>>
    %c44 = arith.constant 44 : index
    %130 = memref.load %arg1[%c44] : memref<98xf32, #tpu.memory_space<smem>>
    %c45 = arith.constant 45 : index
    %131 = memref.load %arg1[%c45] : memref<98xf32, #tpu.memory_space<smem>>
    %c46 = arith.constant 46 : index
    %132 = memref.load %arg1[%c46] : memref<98xf32, #tpu.memory_space<smem>>
    %c47 = arith.constant 47 : index
    %133 = memref.load %arg1[%c47] : memref<98xf32, #tpu.memory_space<smem>>
    %c48 = arith.constant 48 : index
    %134 = memref.load %arg1[%c48] : memref<98xf32, #tpu.memory_space<smem>>
    %c49 = arith.constant 49 : index
    %135 = memref.load %arg1[%c49] : memref<98xf32, #tpu.memory_space<smem>>
    %c50 = arith.constant 50 : index
    %136 = memref.load %arg1[%c50] : memref<98xf32, #tpu.memory_space<smem>>
    %c51 = arith.constant 51 : index
    %137 = memref.load %arg1[%c51] : memref<98xf32, #tpu.memory_space<smem>>
    %c52 = arith.constant 52 : index
    %138 = memref.load %arg1[%c52] : memref<98xf32, #tpu.memory_space<smem>>
    %c53 = arith.constant 53 : index
    %139 = memref.load %arg1[%c53] : memref<98xf32, #tpu.memory_space<smem>>
    %c54 = arith.constant 54 : index
    %140 = memref.load %arg1[%c54] : memref<98xf32, #tpu.memory_space<smem>>
    %c55 = arith.constant 55 : index
    %141 = memref.load %arg1[%c55] : memref<98xf32, #tpu.memory_space<smem>>
    %c56 = arith.constant 56 : index
    %142 = memref.load %arg1[%c56] : memref<98xf32, #tpu.memory_space<smem>>
    %c57 = arith.constant 57 : index
    %143 = memref.load %arg1[%c57] : memref<98xf32, #tpu.memory_space<smem>>
    %c58 = arith.constant 58 : index
    %144 = memref.load %arg1[%c58] : memref<98xf32, #tpu.memory_space<smem>>
    %c59 = arith.constant 59 : index
    %145 = memref.load %arg1[%c59] : memref<98xf32, #tpu.memory_space<smem>>
    %c60 = arith.constant 60 : index
    %146 = memref.load %arg1[%c60] : memref<98xf32, #tpu.memory_space<smem>>
    %c61 = arith.constant 61 : index
    %147 = memref.load %arg1[%c61] : memref<98xf32, #tpu.memory_space<smem>>
    %c62 = arith.constant 62 : index
    %148 = memref.load %arg1[%c62] : memref<98xf32, #tpu.memory_space<smem>>
    %c63 = arith.constant 63 : index
    %149 = memref.load %arg1[%c63] : memref<98xf32, #tpu.memory_space<smem>>
    %c64 = arith.constant 64 : index
    %150 = memref.load %arg1[%c64] : memref<98xf32, #tpu.memory_space<smem>>
    %c65 = arith.constant 65 : index
    %151 = memref.load %arg1[%c65] : memref<98xf32, #tpu.memory_space<smem>>
    %c66 = arith.constant 66 : index
    %152 = memref.load %arg1[%c66] : memref<98xf32, #tpu.memory_space<smem>>
    %c67 = arith.constant 67 : index
    %153 = memref.load %arg1[%c67] : memref<98xf32, #tpu.memory_space<smem>>
    %c68 = arith.constant 68 : index
    %154 = memref.load %arg1[%c68] : memref<98xf32, #tpu.memory_space<smem>>
    %c69 = arith.constant 69 : index
    %155 = memref.load %arg1[%c69] : memref<98xf32, #tpu.memory_space<smem>>
    %c70 = arith.constant 70 : index
    %156 = memref.load %arg1[%c70] : memref<98xf32, #tpu.memory_space<smem>>
    %c71 = arith.constant 71 : index
    %157 = memref.load %arg1[%c71] : memref<98xf32, #tpu.memory_space<smem>>
    %c72 = arith.constant 72 : index
    %158 = memref.load %arg1[%c72] : memref<98xf32, #tpu.memory_space<smem>>
    %c73 = arith.constant 73 : index
    %159 = memref.load %arg1[%c73] : memref<98xf32, #tpu.memory_space<smem>>
    %c74 = arith.constant 74 : index
    %160 = memref.load %arg1[%c74] : memref<98xf32, #tpu.memory_space<smem>>
    %c75 = arith.constant 75 : index
    %161 = memref.load %arg1[%c75] : memref<98xf32, #tpu.memory_space<smem>>
    %c76 = arith.constant 76 : index
    %162 = memref.load %arg1[%c76] : memref<98xf32, #tpu.memory_space<smem>>
    %c77 = arith.constant 77 : index
    %163 = memref.load %arg1[%c77] : memref<98xf32, #tpu.memory_space<smem>>
    %c78 = arith.constant 78 : index
    %164 = memref.load %arg1[%c78] : memref<98xf32, #tpu.memory_space<smem>>
    %c79 = arith.constant 79 : index
    %165 = memref.load %arg1[%c79] : memref<98xf32, #tpu.memory_space<smem>>
    %c80 = arith.constant 80 : index
    %166 = memref.load %arg1[%c80] : memref<98xf32, #tpu.memory_space<smem>>
    %c81 = arith.constant 81 : index
    %167 = memref.load %arg1[%c81] : memref<98xf32, #tpu.memory_space<smem>>
    %c82 = arith.constant 82 : index
    %168 = memref.load %arg1[%c82] : memref<98xf32, #tpu.memory_space<smem>>
    %c83 = arith.constant 83 : index
    %169 = memref.load %arg1[%c83] : memref<98xf32, #tpu.memory_space<smem>>
    %c84 = arith.constant 84 : index
    %170 = memref.load %arg1[%c84] : memref<98xf32, #tpu.memory_space<smem>>
    %c85 = arith.constant 85 : index
    %171 = memref.load %arg1[%c85] : memref<98xf32, #tpu.memory_space<smem>>
    %c86 = arith.constant 86 : index
    %172 = memref.load %arg1[%c86] : memref<98xf32, #tpu.memory_space<smem>>
    %c87 = arith.constant 87 : index
    %173 = memref.load %arg1[%c87] : memref<98xf32, #tpu.memory_space<smem>>
    %c88 = arith.constant 88 : index
    %174 = memref.load %arg1[%c88] : memref<98xf32, #tpu.memory_space<smem>>
    %c89 = arith.constant 89 : index
    %175 = memref.load %arg1[%c89] : memref<98xf32, #tpu.memory_space<smem>>
    %c90 = arith.constant 90 : index
    %176 = memref.load %arg1[%c90] : memref<98xf32, #tpu.memory_space<smem>>
    %c91 = arith.constant 91 : index
    %177 = memref.load %arg1[%c91] : memref<98xf32, #tpu.memory_space<smem>>
    %c92 = arith.constant 92 : index
    %178 = memref.load %arg1[%c92] : memref<98xf32, #tpu.memory_space<smem>>
    %c93 = arith.constant 93 : index
    %179 = memref.load %arg1[%c93] : memref<98xf32, #tpu.memory_space<smem>>
    %c94 = arith.constant 94 : index
    %180 = memref.load %arg1[%c94] : memref<98xf32, #tpu.memory_space<smem>>
    %c95 = arith.constant 95 : index
    %181 = memref.load %arg1[%c95] : memref<98xf32, #tpu.memory_space<smem>>
    %c96 = arith.constant 96 : index
    %182 = memref.load %arg1[%c96] : memref<98xf32, #tpu.memory_space<smem>>
    %c97 = arith.constant 97 : index
    %183 = memref.load %arg1[%c97] : memref<98xf32, #tpu.memory_space<smem>>
    %cst_111 = arith.constant 0.000000e+00 : f32
    %184 = vector.broadcast %cst_111 : f32 to vector<16x44xf32>
    %c0_112 = arith.constant 0 : index
    %c0_113 = arith.constant 0 : index
    %c0_114 = arith.constant 0 : index
    %c0_115 = arith.constant 0 : index
    %185 = vector.load %arg5[%c0_112, %c0_113, %c0_114, %c0_115] : memref<2x7x22x44xf32, #tpu.memory_space<vmem>>, vector<1x1x16x44xf32>
    %186 = vector.shape_cast %185 : vector<1x1x16x44xf32> to vector<16x44xf32>
    %187 = vector.broadcast %86 : f32 to vector<16x44xf32>
    %188 = arith.mulf %187, %186 : vector<16x44xf32>
    %189 = arith.addf %184, %188 : vector<16x44xf32>
    %c0_116 = arith.constant 0 : index
    %c1_117 = arith.constant 1 : index
    %c0_118 = arith.constant 0 : index
    %c0_119 = arith.constant 0 : index
    %190 = vector.load %arg5[%c0_116, %c1_117, %c0_118, %c0_119] : memref<2x7x22x44xf32, #tpu.memory_space<vmem>>, vector<1x1x16x44xf32>
    %191 = vector.shape_cast %190 : vector<1x1x16x44xf32> to vector<16x44xf32>
    %192 = vector.broadcast %87 : f32 to vector<16x44xf32>
    %193 = arith.mulf %192, %191 : vector<16x44xf32>
    %194 = arith.addf %189, %193 : vector<16x44xf32>
    %c0_120 = arith.constant 0 : index
    %c2_121 = arith.constant 2 : index
    %c0_122 = arith.constant 0 : index
    %c0_123 = arith.constant 0 : index
    %195 = vector.load %arg5[%c0_120, %c2_121, %c0_122, %c0_123] : memref<2x7x22x44xf32, #tpu.memory_space<vmem>>, vector<1x1x16x44xf32>
    %196 = vector.shape_cast %195 : vector<1x1x16x44xf32> to vector<16x44xf32>
    %197 = vector.broadcast %88 : f32 to vector<16x44xf32>
    %198 = arith.mulf %197, %196 : vector<16x44xf32>
    %199 = arith.addf %194, %198 : vector<16x44xf32>
    %c0_124 = arith.constant 0 : index
    %c3_125 = arith.constant 3 : index
    %c0_126 = arith.constant 0 : index
    %c0_127 = arith.constant 0 : index
    %200 = vector.load %arg5[%c0_124, %c3_125, %c0_126, %c0_127] : memref<2x7x22x44xf32, #tpu.memory_space<vmem>>, vector<1x1x16x44xf32>
    %201 = vector.shape_cast %200 : vector<1x1x16x44xf32> to vector<16x44xf32>
    %202 = vector.broadcast %89 : f32 to vector<16x44xf32>
    %203 = arith.mulf %202, %201 : vector<16x44xf32>
    %204 = arith.addf %199, %203 : vector<16x44xf32>
    %c0_128 = arith.constant 0 : index
    %c4_129 = arith.constant 4 : index
    %c0_130 = arith.constant 0 : index
    %c0_131 = arith.constant 0 : index
    %205 = vector.load %arg5[%c0_128, %c4_129, %c0_130, %c0_131] : memref<2x7x22x44xf32, #tpu.memory_space<vmem>>, vector<1x1x16x44xf32>
    %206 = vector.shape_cast %205 : vector<1x1x16x44xf32> to vector<16x44xf32>
    %207 = vector.broadcast %90 : f32 to vector<16x44xf32>
    %208 = arith.mulf %207, %206 : vector<16x44xf32>
    %209 = arith.addf %204, %208 : vector<16x44xf32>
    %c0_132 = arith.constant 0 : index
    %c5_133 = arith.constant 5 : index
    %c0_134 = arith.constant 0 : index
    %c0_135 = arith.constant 0 : index
    %210 = vector.load %arg5[%c0_132, %c5_133, %c0_134, %c0_135] : memref<2x7x22x44xf32, #tpu.memory_space<vmem>>, vector<1x1x16x44xf32>
    %211 = vector.shape_cast %210 : vector<1x1x16x44xf32> to vector<16x44xf32>
    %212 = vector.broadcast %91 : f32 to vector<16x44xf32>
    %213 = arith.mulf %212, %211 : vector<16x44xf32>
    %214 = arith.addf %209, %213 : vector<16x44xf32>
    %c0_136 = arith.constant 0 : index
    %c6_137 = arith.constant 6 : index
    %c0_138 = arith.constant 0 : index
    %c0_139 = arith.constant 0 : index
    %215 = vector.load %arg5[%c0_136, %c6_137, %c0_138, %c0_139] : memref<2x7x22x44xf32, #tpu.memory_space<vmem>>, vector<1x1x16x44xf32>
    %216 = vector.shape_cast %215 : vector<1x1x16x44xf32> to vector<16x44xf32>
    %217 = vector.broadcast %92 : f32 to vector<16x44xf32>
    %218 = arith.mulf %217, %216 : vector<16x44xf32>
    %219 = arith.addf %214, %218 : vector<16x44xf32>
    %c0_140 = arith.constant 0 : index
    %c0_141 = arith.constant 0 : index
    %c1_142 = arith.constant 1 : index
    %c0_143 = arith.constant 0 : index
    %220 = vector.load %arg5[%c0_140, %c0_141, %c1_142, %c0_143] : memref<2x7x22x44xf32, #tpu.memory_space<vmem>>, vector<1x1x16x44xf32>
    %221 = vector.shape_cast %220 : vector<1x1x16x44xf32> to vector<16x44xf32>
    %222 = vector.broadcast %93 : f32 to vector<16x44xf32>
    %223 = arith.mulf %222, %221 : vector<16x44xf32>
    %224 = arith.addf %219, %223 : vector<16x44xf32>
    %c0_144 = arith.constant 0 : index
    %c1_145 = arith.constant 1 : index
    %c1_146 = arith.constant 1 : index
    %c0_147 = arith.constant 0 : index
    %225 = vector.load %arg5[%c0_144, %c1_145, %c1_146, %c0_147] : memref<2x7x22x44xf32, #tpu.memory_space<vmem>>, vector<1x1x16x44xf32>
    %226 = vector.shape_cast %225 : vector<1x1x16x44xf32> to vector<16x44xf32>
    %227 = vector.broadcast %94 : f32 to vector<16x44xf32>
    %228 = arith.mulf %227, %226 : vector<16x44xf32>
    %229 = arith.addf %224, %228 : vector<16x44xf32>
    %c0_148 = arith.constant 0 : index
    %c2_149 = arith.constant 2 : index
    %c1_150 = arith.constant 1 : index
    %c0_151 = arith.constant 0 : index
    %230 = vector.load %arg5[%c0_148, %c2_149, %c1_150, %c0_151] : memref<2x7x22x44xf32, #tpu.memory_space<vmem>>, vector<1x1x16x44xf32>
    %231 = vector.shape_cast %230 : vector<1x1x16x44xf32> to vector<16x44xf32>
    %232 = vector.broadcast %95 : f32 to vector<16x44xf32>
    %233 = arith.mulf %232, %231 : vector<16x44xf32>
    %234 = arith.addf %229, %233 : vector<16x44xf32>
    %c0_152 = arith.constant 0 : index
    %c3_153 = arith.constant 3 : index
    %c1_154 = arith.constant 1 : index
    %c0_155 = arith.constant 0 : index
    %235 = vector.load %arg5[%c0_152, %c3_153, %c1_154, %c0_155] : memref<2x7x22x44xf32, #tpu.memory_space<vmem>>, vector<1x1x16x44xf32>
    %236 = vector.shape_cast %235 : vector<1x1x16x44xf32> to vector<16x44xf32>
    %237 = vector.broadcast %96 : f32 to vector<16x44xf32>
    %238 = arith.mulf %237, %236 : vector<16x44xf32>
    %239 = arith.addf %234, %238 : vector<16x44xf32>
    %c0_156 = arith.constant 0 : index
    %c4_157 = arith.constant 4 : index
    %c1_158 = arith.constant 1 : index
    %c0_159 = arith.constant 0 : index
    %240 = vector.load %arg5[%c0_156, %c4_157, %c1_158, %c0_159] : memref<2x7x22x44xf32, #tpu.memory_space<vmem>>, vector<1x1x16x44xf32>
    %241 = vector.shape_cast %240 : vector<1x1x16x44xf32> to vector<16x44xf32>
    %242 = vector.broadcast %97 : f32 to vector<16x44xf32>
    %243 = arith.mulf %242, %241 : vector<16x44xf32>
    %244 = arith.addf %239, %243 : vector<16x44xf32>
    %c0_160 = arith.constant 0 : index
    %c5_161 = arith.constant 5 : index
    %c1_162 = arith.constant 1 : index
    %c0_163 = arith.constant 0 : index
    %245 = vector.load %arg5[%c0_160, %c5_161, %c1_162, %c0_163] : memref<2x7x22x44xf32, #tpu.memory_space<vmem>>, vector<1x1x16x44xf32>
    %246 = vector.shape_cast %245 : vector<1x1x16x44xf32> to vector<16x44xf32>
    %247 = vector.broadcast %98 : f32 to vector<16x44xf32>
    %248 = arith.mulf %247, %246 : vector<16x44xf32>
    %249 = arith.addf %244, %248 : vector<16x44xf32>
    %c0_164 = arith.constant 0 : index
    %c6_165 = arith.constant 6 : index
    %c1_166 = arith.constant 1 : index
    %c0_167 = arith.constant 0 : index
    %250 = vector.load %arg5[%c0_164, %c6_165, %c1_166, %c0_167] : memref<2x7x22x44xf32, #tpu.memory_space<vmem>>, vector<1x1x16x44xf32>
    %251 = vector.shape_cast %250 : vector<1x1x16x44xf32> to vector<16x44xf32>
    %252 = vector.broadcast %99 : f32 to vector<16x44xf32>
    %253 = arith.mulf %252, %251 : vector<16x44xf32>
    %254 = arith.addf %249, %253 : vector<16x44xf32>
    %c0_168 = arith.constant 0 : index
    %c0_169 = arith.constant 0 : index
    %c2_170 = arith.constant 2 : index
    %c0_171 = arith.constant 0 : index
    %255 = vector.load %arg5[%c0_168, %c0_169, %c2_170, %c0_171] : memref<2x7x22x44xf32, #tpu.memory_space<vmem>>, vector<1x1x16x44xf32>
    %256 = vector.shape_cast %255 : vector<1x1x16x44xf32> to vector<16x44xf32>
    %257 = vector.broadcast %100 : f32 to vector<16x44xf32>
    %258 = arith.mulf %257, %256 : vector<16x44xf32>
    %259 = arith.addf %254, %258 : vector<16x44xf32>
    %c0_172 = arith.constant 0 : index
    %c1_173 = arith.constant 1 : index
    %c2_174 = arith.constant 2 : index
    %c0_175 = arith.constant 0 : index
    %260 = vector.load %arg5[%c0_172, %c1_173, %c2_174, %c0_175] : memref<2x7x22x44xf32, #tpu.memory_space<vmem>>, vector<1x1x16x44xf32>
    %261 = vector.shape_cast %260 : vector<1x1x16x44xf32> to vector<16x44xf32>
    %262 = vector.broadcast %101 : f32 to vector<16x44xf32>
    %263 = arith.mulf %262, %261 : vector<16x44xf32>
    %264 = arith.addf %259, %263 : vector<16x44xf32>
    %c0_176 = arith.constant 0 : index
    %c2_177 = arith.constant 2 : index
    %c2_178 = arith.constant 2 : index
    %c0_179 = arith.constant 0 : index
    %265 = vector.load %arg5[%c0_176, %c2_177, %c2_178, %c0_179] : memref<2x7x22x44xf32, #tpu.memory_space<vmem>>, vector<1x1x16x44xf32>
    %266 = vector.shape_cast %265 : vector<1x1x16x44xf32> to vector<16x44xf32>
    %267 = vector.broadcast %102 : f32 to vector<16x44xf32>
    %268 = arith.mulf %267, %266 : vector<16x44xf32>
    %269 = arith.addf %264, %268 : vector<16x44xf32>
    %c0_180 = arith.constant 0 : index
    %c3_181 = arith.constant 3 : index
    %c2_182 = arith.constant 2 : index
    %c0_183 = arith.constant 0 : index
    %270 = vector.load %arg5[%c0_180, %c3_181, %c2_182, %c0_183] : memref<2x7x22x44xf32, #tpu.memory_space<vmem>>, vector<1x1x16x44xf32>
    %271 = vector.shape_cast %270 : vector<1x1x16x44xf32> to vector<16x44xf32>
    %272 = vector.broadcast %103 : f32 to vector<16x44xf32>
    %273 = arith.mulf %272, %271 : vector<16x44xf32>
    %274 = arith.addf %269, %273 : vector<16x44xf32>
    %c0_184 = arith.constant 0 : index
    %c4_185 = arith.constant 4 : index
    %c2_186 = arith.constant 2 : index
    %c0_187 = arith.constant 0 : index
    %275 = vector.load %arg5[%c0_184, %c4_185, %c2_186, %c0_187] : memref<2x7x22x44xf32, #tpu.memory_space<vmem>>, vector<1x1x16x44xf32>
    %276 = vector.shape_cast %275 : vector<1x1x16x44xf32> to vector<16x44xf32>
    %277 = vector.broadcast %104 : f32 to vector<16x44xf32>
    %278 = arith.mulf %277, %276 : vector<16x44xf32>
    %279 = arith.addf %274, %278 : vector<16x44xf32>
    %c0_188 = arith.constant 0 : index
    %c5_189 = arith.constant 5 : index
    %c2_190 = arith.constant 2 : index
    %c0_191 = arith.constant 0 : index
    %280 = vector.load %arg5[%c0_188, %c5_189, %c2_190, %c0_191] : memref<2x7x22x44xf32, #tpu.memory_space<vmem>>, vector<1x1x16x44xf32>
    %281 = vector.shape_cast %280 : vector<1x1x16x44xf32> to vector<16x44xf32>
    %282 = vector.broadcast %105 : f32 to vector<16x44xf32>
    %283 = arith.mulf %282, %281 : vector<16x44xf32>
    %284 = arith.addf %279, %283 : vector<16x44xf32>
    %c0_192 = arith.constant 0 : index
    %c6_193 = arith.constant 6 : index
    %c2_194 = arith.constant 2 : index
    %c0_195 = arith.constant 0 : index
    %285 = vector.load %arg5[%c0_192, %c6_193, %c2_194, %c0_195] : memref<2x7x22x44xf32, #tpu.memory_space<vmem>>, vector<1x1x16x44xf32>
    %286 = vector.shape_cast %285 : vector<1x1x16x44xf32> to vector<16x44xf32>
    %287 = vector.broadcast %106 : f32 to vector<16x44xf32>
    %288 = arith.mulf %287, %286 : vector<16x44xf32>
    %289 = arith.addf %284, %288 : vector<16x44xf32>
    %c0_196 = arith.constant 0 : index
    %c0_197 = arith.constant 0 : index
    %c3_198 = arith.constant 3 : index
    %c0_199 = arith.constant 0 : index
    %290 = vector.load %arg5[%c0_196, %c0_197, %c3_198, %c0_199] : memref<2x7x22x44xf32, #tpu.memory_space<vmem>>, vector<1x1x16x44xf32>
    %291 = vector.shape_cast %290 : vector<1x1x16x44xf32> to vector<16x44xf32>
    %292 = vector.broadcast %107 : f32 to vector<16x44xf32>
    %293 = arith.mulf %292, %291 : vector<16x44xf32>
    %294 = arith.addf %289, %293 : vector<16x44xf32>
    %c0_200 = arith.constant 0 : index
    %c1_201 = arith.constant 1 : index
    %c3_202 = arith.constant 3 : index
    %c0_203 = arith.constant 0 : index
    %295 = vector.load %arg5[%c0_200, %c1_201, %c3_202, %c0_203] : memref<2x7x22x44xf32, #tpu.memory_space<vmem>>, vector<1x1x16x44xf32>
    %296 = vector.shape_cast %295 : vector<1x1x16x44xf32> to vector<16x44xf32>
    %297 = vector.broadcast %108 : f32 to vector<16x44xf32>
    %298 = arith.mulf %297, %296 : vector<16x44xf32>
    %299 = arith.addf %294, %298 : vector<16x44xf32>
    %c0_204 = arith.constant 0 : index
    %c2_205 = arith.constant 2 : index
    %c3_206 = arith.constant 3 : index
    %c0_207 = arith.constant 0 : index
    %300 = vector.load %arg5[%c0_204, %c2_205, %c3_206, %c0_207] : memref<2x7x22x44xf32, #tpu.memory_space<vmem>>, vector<1x1x16x44xf32>
    %301 = vector.shape_cast %300 : vector<1x1x16x44xf32> to vector<16x44xf32>
    %302 = vector.broadcast %109 : f32 to vector<16x44xf32>
    %303 = arith.mulf %302, %301 : vector<16x44xf32>
    %304 = arith.addf %299, %303 : vector<16x44xf32>
    %c0_208 = arith.constant 0 : index
    %c3_209 = arith.constant 3 : index
    %c3_210 = arith.constant 3 : index
    %c0_211 = arith.constant 0 : index
    %305 = vector.load %arg5[%c0_208, %c3_209, %c3_210, %c0_211] : memref<2x7x22x44xf32, #tpu.memory_space<vmem>>, vector<1x1x16x44xf32>
    %306 = vector.shape_cast %305 : vector<1x1x16x44xf32> to vector<16x44xf32>
    %307 = vector.broadcast %110 : f32 to vector<16x44xf32>
    %308 = arith.mulf %307, %306 : vector<16x44xf32>
    %309 = arith.addf %304, %308 : vector<16x44xf32>
    %c0_212 = arith.constant 0 : index
    %c4_213 = arith.constant 4 : index
    %c3_214 = arith.constant 3 : index
    %c0_215 = arith.constant 0 : index
    %310 = vector.load %arg5[%c0_212, %c4_213, %c3_214, %c0_215] : memref<2x7x22x44xf32, #tpu.memory_space<vmem>>, vector<1x1x16x44xf32>
    %311 = vector.shape_cast %310 : vector<1x1x16x44xf32> to vector<16x44xf32>
    %312 = vector.broadcast %111 : f32 to vector<16x44xf32>
    %313 = arith.mulf %312, %311 : vector<16x44xf32>
    %314 = arith.addf %309, %313 : vector<16x44xf32>
    %c0_216 = arith.constant 0 : index
    %c5_217 = arith.constant 5 : index
    %c3_218 = arith.constant 3 : index
    %c0_219 = arith.constant 0 : index
    %315 = vector.load %arg5[%c0_216, %c5_217, %c3_218, %c0_219] : memref<2x7x22x44xf32, #tpu.memory_space<vmem>>, vector<1x1x16x44xf32>
    %316 = vector.shape_cast %315 : vector<1x1x16x44xf32> to vector<16x44xf32>
    %317 = vector.broadcast %112 : f32 to vector<16x44xf32>
    %318 = arith.mulf %317, %316 : vector<16x44xf32>
    %319 = arith.addf %314, %318 : vector<16x44xf32>
    %c0_220 = arith.constant 0 : index
    %c6_221 = arith.constant 6 : index
    %c3_222 = arith.constant 3 : index
    %c0_223 = arith.constant 0 : index
    %320 = vector.load %arg5[%c0_220, %c6_221, %c3_222, %c0_223] : memref<2x7x22x44xf32, #tpu.memory_space<vmem>>, vector<1x1x16x44xf32>
    %321 = vector.shape_cast %320 : vector<1x1x16x44xf32> to vector<16x44xf32>
    %322 = vector.broadcast %113 : f32 to vector<16x44xf32>
    %323 = arith.mulf %322, %321 : vector<16x44xf32>
    %324 = arith.addf %319, %323 : vector<16x44xf32>
    %c0_224 = arith.constant 0 : index
    %c0_225 = arith.constant 0 : index
    %c4_226 = arith.constant 4 : index
    %c0_227 = arith.constant 0 : index
    %325 = vector.load %arg5[%c0_224, %c0_225, %c4_226, %c0_227] : memref<2x7x22x44xf32, #tpu.memory_space<vmem>>, vector<1x1x16x44xf32>
    %326 = vector.shape_cast %325 : vector<1x1x16x44xf32> to vector<16x44xf32>
    %327 = vector.broadcast %114 : f32 to vector<16x44xf32>
    %328 = arith.mulf %327, %326 : vector<16x44xf32>
    %329 = arith.addf %324, %328 : vector<16x44xf32>
    %c0_228 = arith.constant 0 : index
    %c1_229 = arith.constant 1 : index
    %c4_230 = arith.constant 4 : index
    %c0_231 = arith.constant 0 : index
    %330 = vector.load %arg5[%c0_228, %c1_229, %c4_230, %c0_231] : memref<2x7x22x44xf32, #tpu.memory_space<vmem>>, vector<1x1x16x44xf32>
    %331 = vector.shape_cast %330 : vector<1x1x16x44xf32> to vector<16x44xf32>
    %332 = vector.broadcast %115 : f32 to vector<16x44xf32>
    %333 = arith.mulf %332, %331 : vector<16x44xf32>
    %334 = arith.addf %329, %333 : vector<16x44xf32>
    %c0_232 = arith.constant 0 : index
    %c2_233 = arith.constant 2 : index
    %c4_234 = arith.constant 4 : index
    %c0_235 = arith.constant 0 : index
    %335 = vector.load %arg5[%c0_232, %c2_233, %c4_234, %c0_235] : memref<2x7x22x44xf32, #tpu.memory_space<vmem>>, vector<1x1x16x44xf32>
    %336 = vector.shape_cast %335 : vector<1x1x16x44xf32> to vector<16x44xf32>
    %337 = vector.broadcast %116 : f32 to vector<16x44xf32>
    %338 = arith.mulf %337, %336 : vector<16x44xf32>
    %339 = arith.addf %334, %338 : vector<16x44xf32>
    %c0_236 = arith.constant 0 : index
    %c3_237 = arith.constant 3 : index
    %c4_238 = arith.constant 4 : index
    %c0_239 = arith.constant 0 : index
    %340 = vector.load %arg5[%c0_236, %c3_237, %c4_238, %c0_239] : memref<2x7x22x44xf32, #tpu.memory_space<vmem>>, vector<1x1x16x44xf32>
    %341 = vector.shape_cast %340 : vector<1x1x16x44xf32> to vector<16x44xf32>
    %342 = vector.broadcast %117 : f32 to vector<16x44xf32>
    %343 = arith.mulf %342, %341 : vector<16x44xf32>
    %344 = arith.addf %339, %343 : vector<16x44xf32>
    %c0_240 = arith.constant 0 : index
    %c4_241 = arith.constant 4 : index
    %c4_242 = arith.constant 4 : index
    %c0_243 = arith.constant 0 : index
    %345 = vector.load %arg5[%c0_240, %c4_241, %c4_242, %c0_243] : memref<2x7x22x44xf32, #tpu.memory_space<vmem>>, vector<1x1x16x44xf32>
    %346 = vector.shape_cast %345 : vector<1x1x16x44xf32> to vector<16x44xf32>
    %347 = vector.broadcast %118 : f32 to vector<16x44xf32>
    %348 = arith.mulf %347, %346 : vector<16x44xf32>
    %349 = arith.addf %344, %348 : vector<16x44xf32>
    %c0_244 = arith.constant 0 : index
    %c5_245 = arith.constant 5 : index
    %c4_246 = arith.constant 4 : index
    %c0_247 = arith.constant 0 : index
    %350 = vector.load %arg5[%c0_244, %c5_245, %c4_246, %c0_247] : memref<2x7x22x44xf32, #tpu.memory_space<vmem>>, vector<1x1x16x44xf32>
    %351 = vector.shape_cast %350 : vector<1x1x16x44xf32> to vector<16x44xf32>
    %352 = vector.broadcast %119 : f32 to vector<16x44xf32>
    %353 = arith.mulf %352, %351 : vector<16x44xf32>
    %354 = arith.addf %349, %353 : vector<16x44xf32>
    %c0_248 = arith.constant 0 : index
    %c6_249 = arith.constant 6 : index
    %c4_250 = arith.constant 4 : index
    %c0_251 = arith.constant 0 : index
    %355 = vector.load %arg5[%c0_248, %c6_249, %c4_250, %c0_251] : memref<2x7x22x44xf32, #tpu.memory_space<vmem>>, vector<1x1x16x44xf32>
    %356 = vector.shape_cast %355 : vector<1x1x16x44xf32> to vector<16x44xf32>
    %357 = vector.broadcast %120 : f32 to vector<16x44xf32>
    %358 = arith.mulf %357, %356 : vector<16x44xf32>
    %359 = arith.addf %354, %358 : vector<16x44xf32>
    %c0_252 = arith.constant 0 : index
    %c0_253 = arith.constant 0 : index
    %c5_254 = arith.constant 5 : index
    %c0_255 = arith.constant 0 : index
    %360 = vector.load %arg5[%c0_252, %c0_253, %c5_254, %c0_255] : memref<2x7x22x44xf32, #tpu.memory_space<vmem>>, vector<1x1x16x44xf32>
    %361 = vector.shape_cast %360 : vector<1x1x16x44xf32> to vector<16x44xf32>
    %362 = vector.broadcast %121 : f32 to vector<16x44xf32>
    %363 = arith.mulf %362, %361 : vector<16x44xf32>
    %364 = arith.addf %359, %363 : vector<16x44xf32>
    %c0_256 = arith.constant 0 : index
    %c1_257 = arith.constant 1 : index
    %c5_258 = arith.constant 5 : index
    %c0_259 = arith.constant 0 : index
    %365 = vector.load %arg5[%c0_256, %c1_257, %c5_258, %c0_259] : memref<2x7x22x44xf32, #tpu.memory_space<vmem>>, vector<1x1x16x44xf32>
    %366 = vector.shape_cast %365 : vector<1x1x16x44xf32> to vector<16x44xf32>
    %367 = vector.broadcast %122 : f32 to vector<16x44xf32>
    %368 = arith.mulf %367, %366 : vector<16x44xf32>
    %369 = arith.addf %364, %368 : vector<16x44xf32>
    %c0_260 = arith.constant 0 : index
    %c2_261 = arith.constant 2 : index
    %c5_262 = arith.constant 5 : index
    %c0_263 = arith.constant 0 : index
    %370 = vector.load %arg5[%c0_260, %c2_261, %c5_262, %c0_263] : memref<2x7x22x44xf32, #tpu.memory_space<vmem>>, vector<1x1x16x44xf32>
    %371 = vector.shape_cast %370 : vector<1x1x16x44xf32> to vector<16x44xf32>
    %372 = vector.broadcast %123 : f32 to vector<16x44xf32>
    %373 = arith.mulf %372, %371 : vector<16x44xf32>
    %374 = arith.addf %369, %373 : vector<16x44xf32>
    %c0_264 = arith.constant 0 : index
    %c3_265 = arith.constant 3 : index
    %c5_266 = arith.constant 5 : index
    %c0_267 = arith.constant 0 : index
    %375 = vector.load %arg5[%c0_264, %c3_265, %c5_266, %c0_267] : memref<2x7x22x44xf32, #tpu.memory_space<vmem>>, vector<1x1x16x44xf32>
    %376 = vector.shape_cast %375 : vector<1x1x16x44xf32> to vector<16x44xf32>
    %377 = vector.broadcast %124 : f32 to vector<16x44xf32>
    %378 = arith.mulf %377, %376 : vector<16x44xf32>
    %379 = arith.addf %374, %378 : vector<16x44xf32>
    %c0_268 = arith.constant 0 : index
    %c4_269 = arith.constant 4 : index
    %c5_270 = arith.constant 5 : index
    %c0_271 = arith.constant 0 : index
    %380 = vector.load %arg5[%c0_268, %c4_269, %c5_270, %c0_271] : memref<2x7x22x44xf32, #tpu.memory_space<vmem>>, vector<1x1x16x44xf32>
    %381 = vector.shape_cast %380 : vector<1x1x16x44xf32> to vector<16x44xf32>
    %382 = vector.broadcast %125 : f32 to vector<16x44xf32>
    %383 = arith.mulf %382, %381 : vector<16x44xf32>
    %384 = arith.addf %379, %383 : vector<16x44xf32>
    %c0_272 = arith.constant 0 : index
    %c5_273 = arith.constant 5 : index
    %c5_274 = arith.constant 5 : index
    %c0_275 = arith.constant 0 : index
    %385 = vector.load %arg5[%c0_272, %c5_273, %c5_274, %c0_275] : memref<2x7x22x44xf32, #tpu.memory_space<vmem>>, vector<1x1x16x44xf32>
    %386 = vector.shape_cast %385 : vector<1x1x16x44xf32> to vector<16x44xf32>
    %387 = vector.broadcast %126 : f32 to vector<16x44xf32>
    %388 = arith.mulf %387, %386 : vector<16x44xf32>
    %389 = arith.addf %384, %388 : vector<16x44xf32>
    %c0_276 = arith.constant 0 : index
    %c6_277 = arith.constant 6 : index
    %c5_278 = arith.constant 5 : index
    %c0_279 = arith.constant 0 : index
    %390 = vector.load %arg5[%c0_276, %c6_277, %c5_278, %c0_279] : memref<2x7x22x44xf32, #tpu.memory_space<vmem>>, vector<1x1x16x44xf32>
    %391 = vector.shape_cast %390 : vector<1x1x16x44xf32> to vector<16x44xf32>
    %392 = vector.broadcast %127 : f32 to vector<16x44xf32>
    %393 = arith.mulf %392, %391 : vector<16x44xf32>
    %394 = arith.addf %389, %393 : vector<16x44xf32>
    %c0_280 = arith.constant 0 : index
    %c0_281 = arith.constant 0 : index
    %c6_282 = arith.constant 6 : index
    %c0_283 = arith.constant 0 : index
    %395 = vector.load %arg5[%c0_280, %c0_281, %c6_282, %c0_283] : memref<2x7x22x44xf32, #tpu.memory_space<vmem>>, vector<1x1x16x44xf32>
    %396 = vector.shape_cast %395 : vector<1x1x16x44xf32> to vector<16x44xf32>
    %397 = vector.broadcast %128 : f32 to vector<16x44xf32>
    %398 = arith.mulf %397, %396 : vector<16x44xf32>
    %399 = arith.addf %394, %398 : vector<16x44xf32>
    %c0_284 = arith.constant 0 : index
    %c1_285 = arith.constant 1 : index
    %c6_286 = arith.constant 6 : index
    %c0_287 = arith.constant 0 : index
    %400 = vector.load %arg5[%c0_284, %c1_285, %c6_286, %c0_287] : memref<2x7x22x44xf32, #tpu.memory_space<vmem>>, vector<1x1x16x44xf32>
    %401 = vector.shape_cast %400 : vector<1x1x16x44xf32> to vector<16x44xf32>
    %402 = vector.broadcast %129 : f32 to vector<16x44xf32>
    %403 = arith.mulf %402, %401 : vector<16x44xf32>
    %404 = arith.addf %399, %403 : vector<16x44xf32>
    %c0_288 = arith.constant 0 : index
    %c2_289 = arith.constant 2 : index
    %c6_290 = arith.constant 6 : index
    %c0_291 = arith.constant 0 : index
    %405 = vector.load %arg5[%c0_288, %c2_289, %c6_290, %c0_291] : memref<2x7x22x44xf32, #tpu.memory_space<vmem>>, vector<1x1x16x44xf32>
    %406 = vector.shape_cast %405 : vector<1x1x16x44xf32> to vector<16x44xf32>
    %407 = vector.broadcast %130 : f32 to vector<16x44xf32>
    %408 = arith.mulf %407, %406 : vector<16x44xf32>
    %409 = arith.addf %404, %408 : vector<16x44xf32>
    %c0_292 = arith.constant 0 : index
    %c3_293 = arith.constant 3 : index
    %c6_294 = arith.constant 6 : index
    %c0_295 = arith.constant 0 : index
    %410 = vector.load %arg5[%c0_292, %c3_293, %c6_294, %c0_295] : memref<2x7x22x44xf32, #tpu.memory_space<vmem>>, vector<1x1x16x44xf32>
    %411 = vector.shape_cast %410 : vector<1x1x16x44xf32> to vector<16x44xf32>
    %412 = vector.broadcast %131 : f32 to vector<16x44xf32>
    %413 = arith.mulf %412, %411 : vector<16x44xf32>
    %414 = arith.addf %409, %413 : vector<16x44xf32>
    %c0_296 = arith.constant 0 : index
    %c4_297 = arith.constant 4 : index
    %c6_298 = arith.constant 6 : index
    %c0_299 = arith.constant 0 : index
    %415 = vector.load %arg5[%c0_296, %c4_297, %c6_298, %c0_299] : memref<2x7x22x44xf32, #tpu.memory_space<vmem>>, vector<1x1x16x44xf32>
    %416 = vector.shape_cast %415 : vector<1x1x16x44xf32> to vector<16x44xf32>
    %417 = vector.broadcast %132 : f32 to vector<16x44xf32>
    %418 = arith.mulf %417, %416 : vector<16x44xf32>
    %419 = arith.addf %414, %418 : vector<16x44xf32>
    %c0_300 = arith.constant 0 : index
    %c5_301 = arith.constant 5 : index
    %c6_302 = arith.constant 6 : index
    %c0_303 = arith.constant 0 : index
    %420 = vector.load %arg5[%c0_300, %c5_301, %c6_302, %c0_303] : memref<2x7x22x44xf32, #tpu.memory_space<vmem>>, vector<1x1x16x44xf32>
    %421 = vector.shape_cast %420 : vector<1x1x16x44xf32> to vector<16x44xf32>
    %422 = vector.broadcast %133 : f32 to vector<16x44xf32>
    %423 = arith.mulf %422, %421 : vector<16x44xf32>
    %424 = arith.addf %419, %423 : vector<16x44xf32>
    %c0_304 = arith.constant 0 : index
    %c6_305 = arith.constant 6 : index
    %c6_306 = arith.constant 6 : index
    %c0_307 = arith.constant 0 : index
    %425 = vector.load %arg5[%c0_304, %c6_305, %c6_306, %c0_307] : memref<2x7x22x44xf32, #tpu.memory_space<vmem>>, vector<1x1x16x44xf32>
    %426 = vector.shape_cast %425 : vector<1x1x16x44xf32> to vector<16x44xf32>
    %427 = vector.broadcast %134 : f32 to vector<16x44xf32>
    %428 = arith.mulf %427, %426 : vector<16x44xf32>
    %429 = arith.addf %424, %428 : vector<16x44xf32>
    %c1_308 = arith.constant 1 : index
    %c0_309 = arith.constant 0 : index
    %c0_310 = arith.constant 0 : index
    %c0_311 = arith.constant 0 : index
    %430 = vector.load %arg5[%c1_308, %c0_309, %c0_310, %c0_311] : memref<2x7x22x44xf32, #tpu.memory_space<vmem>>, vector<1x1x16x44xf32>
    %431 = vector.shape_cast %430 : vector<1x1x16x44xf32> to vector<16x44xf32>
    %432 = vector.broadcast %135 : f32 to vector<16x44xf32>
    %433 = arith.mulf %432, %431 : vector<16x44xf32>
    %434 = arith.addf %429, %433 : vector<16x44xf32>
    %c1_312 = arith.constant 1 : index
    %c1_313 = arith.constant 1 : index
    %c0_314 = arith.constant 0 : index
    %c0_315 = arith.constant 0 : index
    %435 = vector.load %arg5[%c1_312, %c1_313, %c0_314, %c0_315] : memref<2x7x22x44xf32, #tpu.memory_space<vmem>>, vector<1x1x16x44xf32>
    %436 = vector.shape_cast %435 : vector<1x1x16x44xf32> to vector<16x44xf32>
    %437 = vector.broadcast %136 : f32 to vector<16x44xf32>
    %438 = arith.mulf %437, %436 : vector<16x44xf32>
    %439 = arith.addf %434, %438 : vector<16x44xf32>
    %c1_316 = arith.constant 1 : index
    %c2_317 = arith.constant 2 : index
    %c0_318 = arith.constant 0 : index
    %c0_319 = arith.constant 0 : index
    %440 = vector.load %arg5[%c1_316, %c2_317, %c0_318, %c0_319] : memref<2x7x22x44xf32, #tpu.memory_space<vmem>>, vector<1x1x16x44xf32>
    %441 = vector.shape_cast %440 : vector<1x1x16x44xf32> to vector<16x44xf32>
    %442 = vector.broadcast %137 : f32 to vector<16x44xf32>
    %443 = arith.mulf %442, %441 : vector<16x44xf32>
    %444 = arith.addf %439, %443 : vector<16x44xf32>
    %c1_320 = arith.constant 1 : index
    %c3_321 = arith.constant 3 : index
    %c0_322 = arith.constant 0 : index
    %c0_323 = arith.constant 0 : index
    %445 = vector.load %arg5[%c1_320, %c3_321, %c0_322, %c0_323] : memref<2x7x22x44xf32, #tpu.memory_space<vmem>>, vector<1x1x16x44xf32>
    %446 = vector.shape_cast %445 : vector<1x1x16x44xf32> to vector<16x44xf32>
    %447 = vector.broadcast %138 : f32 to vector<16x44xf32>
    %448 = arith.mulf %447, %446 : vector<16x44xf32>
    %449 = arith.addf %444, %448 : vector<16x44xf32>
    %c1_324 = arith.constant 1 : index
    %c4_325 = arith.constant 4 : index
    %c0_326 = arith.constant 0 : index
    %c0_327 = arith.constant 0 : index
    %450 = vector.load %arg5[%c1_324, %c4_325, %c0_326, %c0_327] : memref<2x7x22x44xf32, #tpu.memory_space<vmem>>, vector<1x1x16x44xf32>
    %451 = vector.shape_cast %450 : vector<1x1x16x44xf32> to vector<16x44xf32>
    %452 = vector.broadcast %139 : f32 to vector<16x44xf32>
    %453 = arith.mulf %452, %451 : vector<16x44xf32>
    %454 = arith.addf %449, %453 : vector<16x44xf32>
    %c1_328 = arith.constant 1 : index
    %c5_329 = arith.constant 5 : index
    %c0_330 = arith.constant 0 : index
    %c0_331 = arith.constant 0 : index
    %455 = vector.load %arg5[%c1_328, %c5_329, %c0_330, %c0_331] : memref<2x7x22x44xf32, #tpu.memory_space<vmem>>, vector<1x1x16x44xf32>
    %456 = vector.shape_cast %455 : vector<1x1x16x44xf32> to vector<16x44xf32>
    %457 = vector.broadcast %140 : f32 to vector<16x44xf32>
    %458 = arith.mulf %457, %456 : vector<16x44xf32>
    %459 = arith.addf %454, %458 : vector<16x44xf32>
    %c1_332 = arith.constant 1 : index
    %c6_333 = arith.constant 6 : index
    %c0_334 = arith.constant 0 : index
    %c0_335 = arith.constant 0 : index
    %460 = vector.load %arg5[%c1_332, %c6_333, %c0_334, %c0_335] : memref<2x7x22x44xf32, #tpu.memory_space<vmem>>, vector<1x1x16x44xf32>
    %461 = vector.shape_cast %460 : vector<1x1x16x44xf32> to vector<16x44xf32>
    %462 = vector.broadcast %141 : f32 to vector<16x44xf32>
    %463 = arith.mulf %462, %461 : vector<16x44xf32>
    %464 = arith.addf %459, %463 : vector<16x44xf32>
    %c1_336 = arith.constant 1 : index
    %c0_337 = arith.constant 0 : index
    %c1_338 = arith.constant 1 : index
    %c0_339 = arith.constant 0 : index
    %465 = vector.load %arg5[%c1_336, %c0_337, %c1_338, %c0_339] : memref<2x7x22x44xf32, #tpu.memory_space<vmem>>, vector<1x1x16x44xf32>
    %466 = vector.shape_cast %465 : vector<1x1x16x44xf32> to vector<16x44xf32>
    %467 = vector.broadcast %142 : f32 to vector<16x44xf32>
    %468 = arith.mulf %467, %466 : vector<16x44xf32>
    %469 = arith.addf %464, %468 : vector<16x44xf32>
    %c1_340 = arith.constant 1 : index
    %c1_341 = arith.constant 1 : index
    %c1_342 = arith.constant 1 : index
    %c0_343 = arith.constant 0 : index
    %470 = vector.load %arg5[%c1_340, %c1_341, %c1_342, %c0_343] : memref<2x7x22x44xf32, #tpu.memory_space<vmem>>, vector<1x1x16x44xf32>
    %471 = vector.shape_cast %470 : vector<1x1x16x44xf32> to vector<16x44xf32>
    %472 = vector.broadcast %143 : f32 to vector<16x44xf32>
    %473 = arith.mulf %472, %471 : vector<16x44xf32>
    %474 = arith.addf %469, %473 : vector<16x44xf32>
    %c1_344 = arith.constant 1 : index
    %c2_345 = arith.constant 2 : index
    %c1_346 = arith.constant 1 : index
    %c0_347 = arith.constant 0 : index
    %475 = vector.load %arg5[%c1_344, %c2_345, %c1_346, %c0_347] : memref<2x7x22x44xf32, #tpu.memory_space<vmem>>, vector<1x1x16x44xf32>
    %476 = vector.shape_cast %475 : vector<1x1x16x44xf32> to vector<16x44xf32>
    %477 = vector.broadcast %144 : f32 to vector<16x44xf32>
    %478 = arith.mulf %477, %476 : vector<16x44xf32>
    %479 = arith.addf %474, %478 : vector<16x44xf32>
    %c1_348 = arith.constant 1 : index
    %c3_349 = arith.constant 3 : index
    %c1_350 = arith.constant 1 : index
    %c0_351 = arith.constant 0 : index
    %480 = vector.load %arg5[%c1_348, %c3_349, %c1_350, %c0_351] : memref<2x7x22x44xf32, #tpu.memory_space<vmem>>, vector<1x1x16x44xf32>
    %481 = vector.shape_cast %480 : vector<1x1x16x44xf32> to vector<16x44xf32>
    %482 = vector.broadcast %145 : f32 to vector<16x44xf32>
    %483 = arith.mulf %482, %481 : vector<16x44xf32>
    %484 = arith.addf %479, %483 : vector<16x44xf32>
    %c1_352 = arith.constant 1 : index
    %c4_353 = arith.constant 4 : index
    %c1_354 = arith.constant 1 : index
    %c0_355 = arith.constant 0 : index
    %485 = vector.load %arg5[%c1_352, %c4_353, %c1_354, %c0_355] : memref<2x7x22x44xf32, #tpu.memory_space<vmem>>, vector<1x1x16x44xf32>
    %486 = vector.shape_cast %485 : vector<1x1x16x44xf32> to vector<16x44xf32>
    %487 = vector.broadcast %146 : f32 to vector<16x44xf32>
    %488 = arith.mulf %487, %486 : vector<16x44xf32>
    %489 = arith.addf %484, %488 : vector<16x44xf32>
    %c1_356 = arith.constant 1 : index
    %c5_357 = arith.constant 5 : index
    %c1_358 = arith.constant 1 : index
    %c0_359 = arith.constant 0 : index
    %490 = vector.load %arg5[%c1_356, %c5_357, %c1_358, %c0_359] : memref<2x7x22x44xf32, #tpu.memory_space<vmem>>, vector<1x1x16x44xf32>
    %491 = vector.shape_cast %490 : vector<1x1x16x44xf32> to vector<16x44xf32>
    %492 = vector.broadcast %147 : f32 to vector<16x44xf32>
    %493 = arith.mulf %492, %491 : vector<16x44xf32>
    %494 = arith.addf %489, %493 : vector<16x44xf32>
    %c1_360 = arith.constant 1 : index
    %c6_361 = arith.constant 6 : index
    %c1_362 = arith.constant 1 : index
    %c0_363 = arith.constant 0 : index
    %495 = vector.load %arg5[%c1_360, %c6_361, %c1_362, %c0_363] : memref<2x7x22x44xf32, #tpu.memory_space<vmem>>, vector<1x1x16x44xf32>
    %496 = vector.shape_cast %495 : vector<1x1x16x44xf32> to vector<16x44xf32>
    %497 = vector.broadcast %148 : f32 to vector<16x44xf32>
    %498 = arith.mulf %497, %496 : vector<16x44xf32>
    %499 = arith.addf %494, %498 : vector<16x44xf32>
    %c1_364 = arith.constant 1 : index
    %c0_365 = arith.constant 0 : index
    %c2_366 = arith.constant 2 : index
    %c0_367 = arith.constant 0 : index
    %500 = vector.load %arg5[%c1_364, %c0_365, %c2_366, %c0_367] : memref<2x7x22x44xf32, #tpu.memory_space<vmem>>, vector<1x1x16x44xf32>
    %501 = vector.shape_cast %500 : vector<1x1x16x44xf32> to vector<16x44xf32>
    %502 = vector.broadcast %149 : f32 to vector<16x44xf32>
    %503 = arith.mulf %502, %501 : vector<16x44xf32>
    %504 = arith.addf %499, %503 : vector<16x44xf32>
    %c1_368 = arith.constant 1 : index
    %c1_369 = arith.constant 1 : index
    %c2_370 = arith.constant 2 : index
    %c0_371 = arith.constant 0 : index
    %505 = vector.load %arg5[%c1_368, %c1_369, %c2_370, %c0_371] : memref<2x7x22x44xf32, #tpu.memory_space<vmem>>, vector<1x1x16x44xf32>
    %506 = vector.shape_cast %505 : vector<1x1x16x44xf32> to vector<16x44xf32>
    %507 = vector.broadcast %150 : f32 to vector<16x44xf32>
    %508 = arith.mulf %507, %506 : vector<16x44xf32>
    %509 = arith.addf %504, %508 : vector<16x44xf32>
    %c1_372 = arith.constant 1 : index
    %c2_373 = arith.constant 2 : index
    %c2_374 = arith.constant 2 : index
    %c0_375 = arith.constant 0 : index
    %510 = vector.load %arg5[%c1_372, %c2_373, %c2_374, %c0_375] : memref<2x7x22x44xf32, #tpu.memory_space<vmem>>, vector<1x1x16x44xf32>
    %511 = vector.shape_cast %510 : vector<1x1x16x44xf32> to vector<16x44xf32>
    %512 = vector.broadcast %151 : f32 to vector<16x44xf32>
    %513 = arith.mulf %512, %511 : vector<16x44xf32>
    %514 = arith.addf %509, %513 : vector<16x44xf32>
    %c1_376 = arith.constant 1 : index
    %c3_377 = arith.constant 3 : index
    %c2_378 = arith.constant 2 : index
    %c0_379 = arith.constant 0 : index
    %515 = vector.load %arg5[%c1_376, %c3_377, %c2_378, %c0_379] : memref<2x7x22x44xf32, #tpu.memory_space<vmem>>, vector<1x1x16x44xf32>
    %516 = vector.shape_cast %515 : vector<1x1x16x44xf32> to vector<16x44xf32>
    %517 = vector.broadcast %152 : f32 to vector<16x44xf32>
    %518 = arith.mulf %517, %516 : vector<16x44xf32>
    %519 = arith.addf %514, %518 : vector<16x44xf32>
    %c1_380 = arith.constant 1 : index
    %c4_381 = arith.constant 4 : index
    %c2_382 = arith.constant 2 : index
    %c0_383 = arith.constant 0 : index
    %520 = vector.load %arg5[%c1_380, %c4_381, %c2_382, %c0_383] : memref<2x7x22x44xf32, #tpu.memory_space<vmem>>, vector<1x1x16x44xf32>
    %521 = vector.shape_cast %520 : vector<1x1x16x44xf32> to vector<16x44xf32>
    %522 = vector.broadcast %153 : f32 to vector<16x44xf32>
    %523 = arith.mulf %522, %521 : vector<16x44xf32>
    %524 = arith.addf %519, %523 : vector<16x44xf32>
    %c1_384 = arith.constant 1 : index
    %c5_385 = arith.constant 5 : index
    %c2_386 = arith.constant 2 : index
    %c0_387 = arith.constant 0 : index
    %525 = vector.load %arg5[%c1_384, %c5_385, %c2_386, %c0_387] : memref<2x7x22x44xf32, #tpu.memory_space<vmem>>, vector<1x1x16x44xf32>
    %526 = vector.shape_cast %525 : vector<1x1x16x44xf32> to vector<16x44xf32>
    %527 = vector.broadcast %154 : f32 to vector<16x44xf32>
    %528 = arith.mulf %527, %526 : vector<16x44xf32>
    %529 = arith.addf %524, %528 : vector<16x44xf32>
    %c1_388 = arith.constant 1 : index
    %c6_389 = arith.constant 6 : index
    %c2_390 = arith.constant 2 : index
    %c0_391 = arith.constant 0 : index
    %530 = vector.load %arg5[%c1_388, %c6_389, %c2_390, %c0_391] : memref<2x7x22x44xf32, #tpu.memory_space<vmem>>, vector<1x1x16x44xf32>
    %531 = vector.shape_cast %530 : vector<1x1x16x44xf32> to vector<16x44xf32>
    %532 = vector.broadcast %155 : f32 to vector<16x44xf32>
    %533 = arith.mulf %532, %531 : vector<16x44xf32>
    %534 = arith.addf %529, %533 : vector<16x44xf32>
    %c1_392 = arith.constant 1 : index
    %c0_393 = arith.constant 0 : index
    %c3_394 = arith.constant 3 : index
    %c0_395 = arith.constant 0 : index
    %535 = vector.load %arg5[%c1_392, %c0_393, %c3_394, %c0_395] : memref<2x7x22x44xf32, #tpu.memory_space<vmem>>, vector<1x1x16x44xf32>
    %536 = vector.shape_cast %535 : vector<1x1x16x44xf32> to vector<16x44xf32>
    %537 = vector.broadcast %156 : f32 to vector<16x44xf32>
    %538 = arith.mulf %537, %536 : vector<16x44xf32>
    %539 = arith.addf %534, %538 : vector<16x44xf32>
    %c1_396 = arith.constant 1 : index
    %c1_397 = arith.constant 1 : index
    %c3_398 = arith.constant 3 : index
    %c0_399 = arith.constant 0 : index
    %540 = vector.load %arg5[%c1_396, %c1_397, %c3_398, %c0_399] : memref<2x7x22x44xf32, #tpu.memory_space<vmem>>, vector<1x1x16x44xf32>
    %541 = vector.shape_cast %540 : vector<1x1x16x44xf32> to vector<16x44xf32>
    %542 = vector.broadcast %157 : f32 to vector<16x44xf32>
    %543 = arith.mulf %542, %541 : vector<16x44xf32>
    %544 = arith.addf %539, %543 : vector<16x44xf32>
    %c1_400 = arith.constant 1 : index
    %c2_401 = arith.constant 2 : index
    %c3_402 = arith.constant 3 : index
    %c0_403 = arith.constant 0 : index
    %545 = vector.load %arg5[%c1_400, %c2_401, %c3_402, %c0_403] : memref<2x7x22x44xf32, #tpu.memory_space<vmem>>, vector<1x1x16x44xf32>
    %546 = vector.shape_cast %545 : vector<1x1x16x44xf32> to vector<16x44xf32>
    %547 = vector.broadcast %158 : f32 to vector<16x44xf32>
    %548 = arith.mulf %547, %546 : vector<16x44xf32>
    %549 = arith.addf %544, %548 : vector<16x44xf32>
    %c1_404 = arith.constant 1 : index
    %c3_405 = arith.constant 3 : index
    %c3_406 = arith.constant 3 : index
    %c0_407 = arith.constant 0 : index
    %550 = vector.load %arg5[%c1_404, %c3_405, %c3_406, %c0_407] : memref<2x7x22x44xf32, #tpu.memory_space<vmem>>, vector<1x1x16x44xf32>
    %551 = vector.shape_cast %550 : vector<1x1x16x44xf32> to vector<16x44xf32>
    %552 = vector.broadcast %159 : f32 to vector<16x44xf32>
    %553 = arith.mulf %552, %551 : vector<16x44xf32>
    %554 = arith.addf %549, %553 : vector<16x44xf32>
    %c1_408 = arith.constant 1 : index
    %c4_409 = arith.constant 4 : index
    %c3_410 = arith.constant 3 : index
    %c0_411 = arith.constant 0 : index
    %555 = vector.load %arg5[%c1_408, %c4_409, %c3_410, %c0_411] : memref<2x7x22x44xf32, #tpu.memory_space<vmem>>, vector<1x1x16x44xf32>
    %556 = vector.shape_cast %555 : vector<1x1x16x44xf32> to vector<16x44xf32>
    %557 = vector.broadcast %160 : f32 to vector<16x44xf32>
    %558 = arith.mulf %557, %556 : vector<16x44xf32>
    %559 = arith.addf %554, %558 : vector<16x44xf32>
    %c1_412 = arith.constant 1 : index
    %c5_413 = arith.constant 5 : index
    %c3_414 = arith.constant 3 : index
    %c0_415 = arith.constant 0 : index
    %560 = vector.load %arg5[%c1_412, %c5_413, %c3_414, %c0_415] : memref<2x7x22x44xf32, #tpu.memory_space<vmem>>, vector<1x1x16x44xf32>
    %561 = vector.shape_cast %560 : vector<1x1x16x44xf32> to vector<16x44xf32>
    %562 = vector.broadcast %161 : f32 to vector<16x44xf32>
    %563 = arith.mulf %562, %561 : vector<16x44xf32>
    %564 = arith.addf %559, %563 : vector<16x44xf32>
    %c1_416 = arith.constant 1 : index
    %c6_417 = arith.constant 6 : index
    %c3_418 = arith.constant 3 : index
    %c0_419 = arith.constant 0 : index
    %565 = vector.load %arg5[%c1_416, %c6_417, %c3_418, %c0_419] : memref<2x7x22x44xf32, #tpu.memory_space<vmem>>, vector<1x1x16x44xf32>
    %566 = vector.shape_cast %565 : vector<1x1x16x44xf32> to vector<16x44xf32>
    %567 = vector.broadcast %162 : f32 to vector<16x44xf32>
    %568 = arith.mulf %567, %566 : vector<16x44xf32>
    %569 = arith.addf %564, %568 : vector<16x44xf32>
    %c1_420 = arith.constant 1 : index
    %c0_421 = arith.constant 0 : index
    %c4_422 = arith.constant 4 : index
    %c0_423 = arith.constant 0 : index
    %570 = vector.load %arg5[%c1_420, %c0_421, %c4_422, %c0_423] : memref<2x7x22x44xf32, #tpu.memory_space<vmem>>, vector<1x1x16x44xf32>
    %571 = vector.shape_cast %570 : vector<1x1x16x44xf32> to vector<16x44xf32>
    %572 = vector.broadcast %163 : f32 to vector<16x44xf32>
    %573 = arith.mulf %572, %571 : vector<16x44xf32>
    %574 = arith.addf %569, %573 : vector<16x44xf32>
    %c1_424 = arith.constant 1 : index
    %c1_425 = arith.constant 1 : index
    %c4_426 = arith.constant 4 : index
    %c0_427 = arith.constant 0 : index
    %575 = vector.load %arg5[%c1_424, %c1_425, %c4_426, %c0_427] : memref<2x7x22x44xf32, #tpu.memory_space<vmem>>, vector<1x1x16x44xf32>
    %576 = vector.shape_cast %575 : vector<1x1x16x44xf32> to vector<16x44xf32>
    %577 = vector.broadcast %164 : f32 to vector<16x44xf32>
    %578 = arith.mulf %577, %576 : vector<16x44xf32>
    %579 = arith.addf %574, %578 : vector<16x44xf32>
    %c1_428 = arith.constant 1 : index
    %c2_429 = arith.constant 2 : index
    %c4_430 = arith.constant 4 : index
    %c0_431 = arith.constant 0 : index
    %580 = vector.load %arg5[%c1_428, %c2_429, %c4_430, %c0_431] : memref<2x7x22x44xf32, #tpu.memory_space<vmem>>, vector<1x1x16x44xf32>
    %581 = vector.shape_cast %580 : vector<1x1x16x44xf32> to vector<16x44xf32>
    %582 = vector.broadcast %165 : f32 to vector<16x44xf32>
    %583 = arith.mulf %582, %581 : vector<16x44xf32>
    %584 = arith.addf %579, %583 : vector<16x44xf32>
    %c1_432 = arith.constant 1 : index
    %c3_433 = arith.constant 3 : index
    %c4_434 = arith.constant 4 : index
    %c0_435 = arith.constant 0 : index
    %585 = vector.load %arg5[%c1_432, %c3_433, %c4_434, %c0_435] : memref<2x7x22x44xf32, #tpu.memory_space<vmem>>, vector<1x1x16x44xf32>
    %586 = vector.shape_cast %585 : vector<1x1x16x44xf32> to vector<16x44xf32>
    %587 = vector.broadcast %166 : f32 to vector<16x44xf32>
    %588 = arith.mulf %587, %586 : vector<16x44xf32>
    %589 = arith.addf %584, %588 : vector<16x44xf32>
    %c1_436 = arith.constant 1 : index
    %c4_437 = arith.constant 4 : index
    %c4_438 = arith.constant 4 : index
    %c0_439 = arith.constant 0 : index
    %590 = vector.load %arg5[%c1_436, %c4_437, %c4_438, %c0_439] : memref<2x7x22x44xf32, #tpu.memory_space<vmem>>, vector<1x1x16x44xf32>
    %591 = vector.shape_cast %590 : vector<1x1x16x44xf32> to vector<16x44xf32>
    %592 = vector.broadcast %167 : f32 to vector<16x44xf32>
    %593 = arith.mulf %592, %591 : vector<16x44xf32>
    %594 = arith.addf %589, %593 : vector<16x44xf32>
    %c1_440 = arith.constant 1 : index
    %c5_441 = arith.constant 5 : index
    %c4_442 = arith.constant 4 : index
    %c0_443 = arith.constant 0 : index
    %595 = vector.load %arg5[%c1_440, %c5_441, %c4_442, %c0_443] : memref<2x7x22x44xf32, #tpu.memory_space<vmem>>, vector<1x1x16x44xf32>
    %596 = vector.shape_cast %595 : vector<1x1x16x44xf32> to vector<16x44xf32>
    %597 = vector.broadcast %168 : f32 to vector<16x44xf32>
    %598 = arith.mulf %597, %596 : vector<16x44xf32>
    %599 = arith.addf %594, %598 : vector<16x44xf32>
    %c1_444 = arith.constant 1 : index
    %c6_445 = arith.constant 6 : index
    %c4_446 = arith.constant 4 : index
    %c0_447 = arith.constant 0 : index
    %600 = vector.load %arg5[%c1_444, %c6_445, %c4_446, %c0_447] : memref<2x7x22x44xf32, #tpu.memory_space<vmem>>, vector<1x1x16x44xf32>
    %601 = vector.shape_cast %600 : vector<1x1x16x44xf32> to vector<16x44xf32>
    %602 = vector.broadcast %169 : f32 to vector<16x44xf32>
    %603 = arith.mulf %602, %601 : vector<16x44xf32>
    %604 = arith.addf %599, %603 : vector<16x44xf32>
    %c1_448 = arith.constant 1 : index
    %c0_449 = arith.constant 0 : index
    %c5_450 = arith.constant 5 : index
    %c0_451 = arith.constant 0 : index
    %605 = vector.load %arg5[%c1_448, %c0_449, %c5_450, %c0_451] : memref<2x7x22x44xf32, #tpu.memory_space<vmem>>, vector<1x1x16x44xf32>
    %606 = vector.shape_cast %605 : vector<1x1x16x44xf32> to vector<16x44xf32>
    %607 = vector.broadcast %170 : f32 to vector<16x44xf32>
    %608 = arith.mulf %607, %606 : vector<16x44xf32>
    %609 = arith.addf %604, %608 : vector<16x44xf32>
    %c1_452 = arith.constant 1 : index
    %c1_453 = arith.constant 1 : index
    %c5_454 = arith.constant 5 : index
    %c0_455 = arith.constant 0 : index
    %610 = vector.load %arg5[%c1_452, %c1_453, %c5_454, %c0_455] : memref<2x7x22x44xf32, #tpu.memory_space<vmem>>, vector<1x1x16x44xf32>
    %611 = vector.shape_cast %610 : vector<1x1x16x44xf32> to vector<16x44xf32>
    %612 = vector.broadcast %171 : f32 to vector<16x44xf32>
    %613 = arith.mulf %612, %611 : vector<16x44xf32>
    %614 = arith.addf %609, %613 : vector<16x44xf32>
    %c1_456 = arith.constant 1 : index
    %c2_457 = arith.constant 2 : index
    %c5_458 = arith.constant 5 : index
    %c0_459 = arith.constant 0 : index
    %615 = vector.load %arg5[%c1_456, %c2_457, %c5_458, %c0_459] : memref<2x7x22x44xf32, #tpu.memory_space<vmem>>, vector<1x1x16x44xf32>
    %616 = vector.shape_cast %615 : vector<1x1x16x44xf32> to vector<16x44xf32>
    %617 = vector.broadcast %172 : f32 to vector<16x44xf32>
    %618 = arith.mulf %617, %616 : vector<16x44xf32>
    %619 = arith.addf %614, %618 : vector<16x44xf32>
    %c1_460 = arith.constant 1 : index
    %c3_461 = arith.constant 3 : index
    %c5_462 = arith.constant 5 : index
    %c0_463 = arith.constant 0 : index
    %620 = vector.load %arg5[%c1_460, %c3_461, %c5_462, %c0_463] : memref<2x7x22x44xf32, #tpu.memory_space<vmem>>, vector<1x1x16x44xf32>
    %621 = vector.shape_cast %620 : vector<1x1x16x44xf32> to vector<16x44xf32>
    %622 = vector.broadcast %173 : f32 to vector<16x44xf32>
    %623 = arith.mulf %622, %621 : vector<16x44xf32>
    %624 = arith.addf %619, %623 : vector<16x44xf32>
    %c1_464 = arith.constant 1 : index
    %c4_465 = arith.constant 4 : index
    %c5_466 = arith.constant 5 : index
    %c0_467 = arith.constant 0 : index
    %625 = vector.load %arg5[%c1_464, %c4_465, %c5_466, %c0_467] : memref<2x7x22x44xf32, #tpu.memory_space<vmem>>, vector<1x1x16x44xf32>
    %626 = vector.shape_cast %625 : vector<1x1x16x44xf32> to vector<16x44xf32>
    %627 = vector.broadcast %174 : f32 to vector<16x44xf32>
    %628 = arith.mulf %627, %626 : vector<16x44xf32>
    %629 = arith.addf %624, %628 : vector<16x44xf32>
    %c1_468 = arith.constant 1 : index
    %c5_469 = arith.constant 5 : index
    %c5_470 = arith.constant 5 : index
    %c0_471 = arith.constant 0 : index
    %630 = vector.load %arg5[%c1_468, %c5_469, %c5_470, %c0_471] : memref<2x7x22x44xf32, #tpu.memory_space<vmem>>, vector<1x1x16x44xf32>
    %631 = vector.shape_cast %630 : vector<1x1x16x44xf32> to vector<16x44xf32>
    %632 = vector.broadcast %175 : f32 to vector<16x44xf32>
    %633 = arith.mulf %632, %631 : vector<16x44xf32>
    %634 = arith.addf %629, %633 : vector<16x44xf32>
    %c1_472 = arith.constant 1 : index
    %c6_473 = arith.constant 6 : index
    %c5_474 = arith.constant 5 : index
    %c0_475 = arith.constant 0 : index
    %635 = vector.load %arg5[%c1_472, %c6_473, %c5_474, %c0_475] : memref<2x7x22x44xf32, #tpu.memory_space<vmem>>, vector<1x1x16x44xf32>
    %636 = vector.shape_cast %635 : vector<1x1x16x44xf32> to vector<16x44xf32>
    %637 = vector.broadcast %176 : f32 to vector<16x44xf32>
    %638 = arith.mulf %637, %636 : vector<16x44xf32>
    %639 = arith.addf %634, %638 : vector<16x44xf32>
    %c1_476 = arith.constant 1 : index
    %c0_477 = arith.constant 0 : index
    %c6_478 = arith.constant 6 : index
    %c0_479 = arith.constant 0 : index
    %640 = vector.load %arg5[%c1_476, %c0_477, %c6_478, %c0_479] : memref<2x7x22x44xf32, #tpu.memory_space<vmem>>, vector<1x1x16x44xf32>
    %641 = vector.shape_cast %640 : vector<1x1x16x44xf32> to vector<16x44xf32>
    %642 = vector.broadcast %177 : f32 to vector<16x44xf32>
    %643 = arith.mulf %642, %641 : vector<16x44xf32>
    %644 = arith.addf %639, %643 : vector<16x44xf32>
    %c1_480 = arith.constant 1 : index
    %c1_481 = arith.constant 1 : index
    %c6_482 = arith.constant 6 : index
    %c0_483 = arith.constant 0 : index
    %645 = vector.load %arg5[%c1_480, %c1_481, %c6_482, %c0_483] : memref<2x7x22x44xf32, #tpu.memory_space<vmem>>, vector<1x1x16x44xf32>
    %646 = vector.shape_cast %645 : vector<1x1x16x44xf32> to vector<16x44xf32>
    %647 = vector.broadcast %178 : f32 to vector<16x44xf32>
    %648 = arith.mulf %647, %646 : vector<16x44xf32>
    %649 = arith.addf %644, %648 : vector<16x44xf32>
    %c1_484 = arith.constant 1 : index
    %c2_485 = arith.constant 2 : index
    %c6_486 = arith.constant 6 : index
    %c0_487 = arith.constant 0 : index
    %650 = vector.load %arg5[%c1_484, %c2_485, %c6_486, %c0_487] : memref<2x7x22x44xf32, #tpu.memory_space<vmem>>, vector<1x1x16x44xf32>
    %651 = vector.shape_cast %650 : vector<1x1x16x44xf32> to vector<16x44xf32>
    %652 = vector.broadcast %179 : f32 to vector<16x44xf32>
    %653 = arith.mulf %652, %651 : vector<16x44xf32>
    %654 = arith.addf %649, %653 : vector<16x44xf32>
    %c1_488 = arith.constant 1 : index
    %c3_489 = arith.constant 3 : index
    %c6_490 = arith.constant 6 : index
    %c0_491 = arith.constant 0 : index
    %655 = vector.load %arg5[%c1_488, %c3_489, %c6_490, %c0_491] : memref<2x7x22x44xf32, #tpu.memory_space<vmem>>, vector<1x1x16x44xf32>
    %656 = vector.shape_cast %655 : vector<1x1x16x44xf32> to vector<16x44xf32>
    %657 = vector.broadcast %180 : f32 to vector<16x44xf32>
    %658 = arith.mulf %657, %656 : vector<16x44xf32>
    %659 = arith.addf %654, %658 : vector<16x44xf32>
    %c1_492 = arith.constant 1 : index
    %c4_493 = arith.constant 4 : index
    %c6_494 = arith.constant 6 : index
    %c0_495 = arith.constant 0 : index
    %660 = vector.load %arg5[%c1_492, %c4_493, %c6_494, %c0_495] : memref<2x7x22x44xf32, #tpu.memory_space<vmem>>, vector<1x1x16x44xf32>
    %661 = vector.shape_cast %660 : vector<1x1x16x44xf32> to vector<16x44xf32>
    %662 = vector.broadcast %181 : f32 to vector<16x44xf32>
    %663 = arith.mulf %662, %661 : vector<16x44xf32>
    %664 = arith.addf %659, %663 : vector<16x44xf32>
    %c1_496 = arith.constant 1 : index
    %c5_497 = arith.constant 5 : index
    %c6_498 = arith.constant 6 : index
    %c0_499 = arith.constant 0 : index
    %665 = vector.load %arg5[%c1_496, %c5_497, %c6_498, %c0_499] : memref<2x7x22x44xf32, #tpu.memory_space<vmem>>, vector<1x1x16x44xf32>
    %666 = vector.shape_cast %665 : vector<1x1x16x44xf32> to vector<16x44xf32>
    %667 = vector.broadcast %182 : f32 to vector<16x44xf32>
    %668 = arith.mulf %667, %666 : vector<16x44xf32>
    %669 = arith.addf %664, %668 : vector<16x44xf32>
    %c1_500 = arith.constant 1 : index
    %c6_501 = arith.constant 6 : index
    %c6_502 = arith.constant 6 : index
    %c0_503 = arith.constant 0 : index
    %670 = vector.load %arg5[%c1_500, %c6_501, %c6_502, %c0_503] : memref<2x7x22x44xf32, #tpu.memory_space<vmem>>, vector<1x1x16x44xf32>
    %671 = vector.shape_cast %670 : vector<1x1x16x44xf32> to vector<16x44xf32>
    %672 = vector.broadcast %183 : f32 to vector<16x44xf32>
    %673 = arith.mulf %672, %671 : vector<16x44xf32>
    %674 = arith.addf %669, %673 : vector<16x44xf32>
    %cst_504 = arith.constant 0.000000e+00 : f32
    %675 = vector.broadcast %cst_504 : f32 to vector<16x44xf32>
    %676 = arith.subf %675, %674 : vector<16x44xf32>
    %677 = math.exp %676 : vector<16x44xf32>
    %cst_505 = arith.constant 1.000000e+00 : f32
    %678 = vector.broadcast %cst_505 : f32 to vector<16x44xf32>
    %679 = arith.addf %678, %677 : vector<16x44xf32>
    %680 = tpu.reciprocal %679 : vector<16x44xf32> -> vector<16x44xf32>
    %c0_506 = arith.constant 0 : index
    %c0_507 = arith.constant 0 : index
    %c0_508 = arith.constant 0 : index
    %681 = vector.load %arg3[%c0_506, %c0_507, %c0_508] : memref<1x16x44xf32, #tpu.memory_space<vmem>>, vector<1x16x44xf32>
    %682 = vector.shape_cast %681 : vector<1x16x44xf32> to vector<16x44xf32>
    %683 = vector.shape_cast %680 : vector<16x44xf32> to vector<1x16x44xf32>
    tpu.vector_store %arg3[%c0_506, %c0_507, %c0_508], %683 {strides = array<i32>} : memref<1x16x44xf32, #tpu.memory_space<vmem>>, vector<1x16x44xf32>,
    return
  }
  func.func @transform_0(%arg0: i32) -> i32 {
    %c0_i32 = arith.constant 0 : i32
    %c0_i32_0 = arith.constant 0 : i32
    return %c0_i32 : i32
  }
  func.func @transform_1(%arg0: i32) -> (i32, i32, i32, i32) {
    %c0_i32 = arith.constant 0 : i32
    %c0_i32_0 = arith.constant 0 : i32
    %c0_i32_1 = arith.constant 0 : i32
    %c0_i32_2 = arith.constant 0 : i32
    return %arg0, %c0_i32, %c0_i32_0, %c0_i32_1 : i32, i32, i32, i32
  }
  func.func @transform_2(%arg0: i32) -> (i32, i32, i32) {
    %c0_i32 = arith.constant 0 : i32
    %c0_i32_0 = arith.constant 0 : i32
    %c0_i32_1 = arith.constant 0 : i32
    return %arg0, %c0_i32, %c0_i32_0 : i32, i32, i32
  }
}

</mosaic_0001>

<llo_original>
// kernel: tpu_custom_call.1
$region0: #{tpu_custom_call.1}
  #allocation0 [shape = 'u32[]', space=smem, size = 0x4, offset = 0x4, fixed_abs, tag = 'smem constant byte address 0x4 - core index']
  #allocation1 [shape = 'u32[72,128]{1,0:T(1,128)}', space=vmem, size = 0x9000, scoped, tag = 'internal scratch']
  #allocation2 [shape = 'f32[44,50]{1,0:T(8,128)}', space=vmem, size = 0x6000, scoped, tag = 'scratch operand']
  #allocation3 [shape = 'f32[2,7,22,44]{3,2,1,0:T(8,128)}', space=vmem, size = 0x2a000, scoped, tag = 'scratch operand']
  %s0 = inlined_call_operand.hbm [shape: f32[98], index: 0, kind: input, shape index: {}]
  %s1 = inlined_call_operand.hbm [shape: f32[2,4,16,16], index: 1, kind: input, shape index: {}]
  %s2 = inlined_call_operand.hbm [shape: f32[1,16,44], index: 2, kind: output, shape index: {}]
  %s3 = sld [smem:[#allocation0]]
  $region26: #{tpu_custom_call.1} parent=0
    _
  %s5 = ssub.s32 1, %s3
  %s6 = scalar_select 0, %s5, %s3
  $region1: #{tpu_custom_call.1} parent=0
    #allocation4 [shape = 'u8[512]{0}', space=smem, size = 0x200, scoped, tag = 'input window, operand 0, single buffered']
    #allocation5 [shape = 's32[1]{0}', space=sflag, size = 0x4, scoped, tag = 'scoped memory for tpu_custom_call.1']
    #allocation6 [shape = 's32[1]{0}', space=sflag, size = 0x4, scoped, tag = 'scoped memory for tpu_custom_call.1']
    #allocation7 [shape = 's32[1]{0}', space=sflag, size = 0x4, scoped, tag = 'scoped memory for tpu_custom_call.1']
    #allocation8 [shape = 'u8[65536]{0}', space=vmem, size = 0x10000, scoped, tag = 'input window, operand 1, single buffered']
    #allocation9 [shape = 'u8[8192]{0}', space=vmem, size = 0x2000, scoped, tag = 'output window, operand 0, single buffered']
    %7 = vsyncpa [#allocation7], 0
    %8 = vsyncpa [#allocation5], 0
    %9 = vsyncpa [#allocation6], 0
    // Predicated region
    $region2: #{tpu_custom_call.1} parent=1 // pred_check
      _
    $region3: #{tpu_custom_call.1} parent=1 // pred_check_branch
      %11 = sbr.rel (0) target = $region5
    $region4: #{tpu_custom_call.1} parent=1 // pred_region
      %13 = vsyncadd [#allocation7], 0
      %s15 = sshll.u32 %s0, 4
      %s16 = int_to_ptr.hbm [resolvable:$true] %s15
      %18 = dma.hbm_to_smem %s16, 16, [#allocation4], [#allocation7]
    $region5: #{tpu_custom_call.1} parent=1 // pred_fallthru
      _
    // Predicated region
    $region6: #{tpu_custom_call.1} parent=1 // pred_check
      _
    $region7: #{tpu_custom_call.1} parent=1 // pred_check_branch
      %20 = sbr.rel (0) target = $region9
    $region8: #{tpu_custom_call.1} parent=1 // pred_region
      %22 = vsyncadd [#allocation5], 0
      %s23 = sshll.u32 %s1, 4
      %s24 = int_to_ptr.hbm [resolvable:$true] %s23
      %s25 = sshll.u32 [#allocation8], 4
      %s26 = int_to_ptr.vmem [resolvable:$true] %s25
      %31 = dma.hbm_to_vmem [thread:$0]  %s24, 2048, %s26, [#allocation5], 128, 128, 8
    $region9: #{tpu_custom_call.1} parent=1 // pred_fallthru
      _
    // Predicated region
    $region10: #{tpu_custom_call.1} parent=1 // pred_check
      _
    $region11: #{tpu_custom_call.1} parent=1 // pred_check_branch
      %33 = sbr.rel (0) target = $region13
    $region12: #{tpu_custom_call.1} parent=1 // pred_region
      %35 = dma.done [#allocation7], 16
    $region13: #{tpu_custom_call.1} parent=1 // pred_fallthru
      _
    // Predicated region
    $region14: #{tpu_custom_call.1} parent=1 // pred_check
      _
    $region15: #{tpu_custom_call.1} parent=1 // pred_check_branch
      %37 = sbr.rel (0) target = $region17
    $region16: #{tpu_custom_call.1} parent=1 // pred_region
      %39 = dma.done [#allocation5], 2048
    $region17: #{tpu_custom_call.1} parent=1 // pred_fallthru
      _
    %40 = sfence
    %v41 = vld [vmem:[#allocation8] sm:$0xff]
    %v42 = vld [vmem:[#allocation8 + $0x8] sm:$0xff]
    %v43 = vld [vmem:[#allocation8 + $0x40] sm:$0xff]
    %v44 = vld [vmem:[#allocation8 + $0x48] sm:$0xff]
    %s45 = scalar_lea.vmem [#allocation8], 16
    %v46 = vld [vmem:[%s45] sm:$0xff]
    %v47 = vld [vmem:[%s45 + $0x8] sm:$0xff]
    %v48 = vld [vmem:[%s45 + $0x40] sm:$0xff]
    %v49 = vld [vmem:[%s45 + $0x48] sm:$0xff]
    %v50 = vadd.f32 %v41, %v46
    %v51 = vadd.f32 %v42, %v47
    %v52 = vadd.f32 %v43, %v48
    %v53 = vadd.f32 %v44, %v49
    %v54 = vmax.f32 %v41, %v46
    %v55 = vmax.f32 %v42, %v47
    %v56 = vmax.f32 %v43, %v48
    %v57 = vmax.f32 %v44, %v49
    %s58 = scalar_lea.vmem [#allocation8], 32
    %v59 = vld [vmem:[%s58] sm:$0xff]
    %v60 = vld [vmem:[%s58 + $0x8] sm:$0xff]
    %v61 = vld [vmem:[%s58 + $0x40] sm:$0xff]
    %v62 = vld [vmem:[%s58 + $0x48] sm:$0xff]
    %v63 = vadd.f32 %v50, %v59
    %v64 = vadd.f32 %v51, %v60
    %v65 = vadd.f32 %v52, %v61
    %v66 = vadd.f32 %v53, %v62
    %v67 = vmax.f32 %v54, %v59
    %v68 = vmax.f32 %v55, %v60
    %v69 = vmax.f32 %v56, %v61
    %v70 = vmax.f32 %v57, %v62
    %s71 = scalar_lea.vmem [#allocation8], 48
    %v72 = vld [vmem:[%s71] sm:$0xff]
    %v73 = vld [vmem:[%s71 + $0x8] sm:$0xff]
    %v74 = vld [vmem:[%s71 + $0x40] sm:$0xff]
    %v75 = vld [vmem:[%s71 + $0x48] sm:$0xff]
    %v76 = vadd.f32 %v63, %v72
    %v77 = vadd.f32 %v64, %v73
    %v78 = vadd.f32 %v65, %v74
    %v79 = vadd.f32 %v66, %v75
    %v80 = vmax.f32 %v67, %v72
    %v81 = vmax.f32 %v68, %v73
    %v82 = vmax.f32 %v69, %v74
    %v83 = vmax.f32 %v70, %v75
    %v84 = vmul.f32 %v76, 0.25
    %v85 = vmul.f32 %v77, 0.25
    %v86 = vmul.f32 %v78, 0.25
    %v87 = vmul.f32 %v79, 0.25
    %vm88 = vcmask 408576
    %89 = vst.msk [vmem:[#allocation2] sm:$0xff] %vm88, 0.0
    %90 = vst.msk [vmem:[#allocation2 + $0x8] sm:$0xff] %vm88, 0.0
    %91 = vst.msk [vmem:[#allocation2 + $0x10] sm:$0xff] %vm88, 0.0
    %92 = vst.msk [vmem:[#allocation2 + $0x18] sm:$0xff] %vm88, 0.0
    %93 = vst.msk [vmem:[#allocation2 + $0x20] sm:$0xff] %vm88, 0.0
    %vm94 = vcmask 404480
    %95 = vst.msk [vmem:[#allocation2 + $0x28] sm:$0xf] %vm94, 0.0
    %98 = vrot.lane.b32.xlu0 %v84, 3
    %v99 = vpop.permute.xlu0 %98
    %100 = vrot.lane.b32.xlu0 %v85, 3
    %v101 = vpop.permute.xlu0 %100
    %vm104 = vcmask 154648
    %105 = vst.msk [vmem:[#allocation2 + $0x3] sm:$0xff] %vm104, %v99
    %106 = vst.msk [vmem:[#allocation2 + $0xb] sm:$0xff] %vm104, %v101
    %109 = vrot.lane.b32.xlu0 %v86, 25
    %v110 = vpop.permute.xlu0 %109
    %111 = vrot.lane.b32.xlu0 %v87, 25
    %v112 = vpop.permute.xlu0 %111
    %vm115 = vcmask 335048
    %116 = vst.msk [vmem:[#allocation2 + $0x3] sm:$0xff] %vm115, %v110
    %117 = vst.msk [vmem:[#allocation2 + $0xb] sm:$0xff] %vm115, %v112
    %120 = vrot.lane.b32.xlu0 %v80, 3
    %v121 = vpop.permute.xlu0 %120
    %122 = vrot.lane.b32.xlu0 %v81, 3
    %v123 = vpop.permute.xlu0 %122
    %126 = vst.msk [vmem:[#allocation2 + $0x19] sm:$0xff] %vm104, %v121
    %127 = vst.msk [vmem:[#allocation2 + $0x21] sm:$0xff] %vm104, %v123
    %130 = vrot.lane.b32.xlu0 %v82, 25
    %v131 = vpop.permute.xlu0 %130
    %132 = vrot.lane.b32.xlu0 %v83, 25
    %v133 = vpop.permute.xlu0 %132
    %136 = vst.msk [vmem:[#allocation2 + $0x19] sm:$0xff] %vm115, %v131
    %137 = vst.msk [vmem:[#allocation2 + $0x21] sm:$0xff] %vm115, %v133
    %v138 = vld [vmem:[#allocation2] sm:$0xff]
    %v139 = vld [vmem:[#allocation2 + $0x8] sm:$0xff]
    %v140 = vld [vmem:[#allocation2 + $0x10] sm:$0x3f]
    %vm141 = vcmask 359424
    %142 = vst.msk [vmem:[#allocation3] sm:$0xff] %vm141, %v138
    %143 = vst.msk [vmem:[#allocation3 + $0x8] sm:$0xff] %vm141, %v139
    %vm144 = vcmask 357376
    %145 = vst.msk [vmem:[#allocation3 + $0x10] sm:$0x3f] %vm144, %v140
    %v146 = vld [vmem:[#allocation2] sm:$0xff]
    %v147 = vld [vmem:[#allocation2 + $0x8] sm:$0xff]
    %v148 = vld [vmem:[#allocation2 + $0x10] sm:$0x3f]
    %152 = vrot.lane.b32.xlu0 %v146, 127
    %v153 = vpop.permute.xlu0 %152
    %154 = vrot.lane.b32.xlu0 %v147, 127
    %v155 = vpop.permute.xlu0 %154
    %156 = vrot.lane.b32.xlu0 %v148, 127
    %v157 = vpop.permute.xlu0 %156
    %s161 = scalar_lea.vmem [#allocation3], 24
    %162 = vst.msk [vmem:[%s161] sm:$0xff] %vm141, %v153
    %163 = vst.msk [vmem:[%s161 + $0x8] sm:$0xff] %vm141, %v155
    %164 = vst.msk [vmem:[%s161 + $0x10] sm:$0x3f] %vm144, %v157
    %v165 = vld [vmem:[#allocation2] sm:$0xff]
    %v166 = vld [vmem:[#allocation2 + $0x8] sm:$0xff]
    %v167 = vld [vmem:[#allocation2 + $0x10] sm:$0x3f]
    %171 = vrot.lane.b32.xlu0 %v165, 126
    %v172 = vpop.permute.xlu0 %171
    %173 = vrot.lane.b32.xlu0 %v166, 126
    %v174 = vpop.permute.xlu0 %173
    %175 = vrot.lane.b32.xlu0 %v167, 126
    %v176 = vpop.permute.xlu0 %175
    %s180 = scalar_lea.vmem [#allocation3], 48
    %181 = vst.msk [vmem:[%s180] sm:$0xff] %vm141, %v172
    %182 = vst.msk [vmem:[%s180 + $0x8] sm:$0xff] %vm141, %v174
    %183 = vst.msk [vmem:[%s180 + $0x10] sm:$0x3f] %vm144, %v176
    %v184 = vld [vmem:[#allocation2] sm:$0xff]
    %v185 = vld [vmem:[#allocation2 + $0x8] sm:$0xff]
    %v186 = vld [vmem:[#allocation2 + $0x10] sm:$0x3f]
    %190 = vrot.lane.b32.xlu0 %v184, 125
    %v191 = vpop.permute.xlu0 %190
    %192 = vrot.lane.b32.xlu0 %v185, 125
    %v193 = vpop.permute.xlu0 %192
    %194 = vrot.lane.b32.xlu0 %v186, 125
    %v195 = vpop.permute.xlu0 %194
    %s199 = scalar_lea.vmem [#allocation3], 72
    %200 = vst.msk [vmem:[%s199] sm:$0xff] %vm141, %v191
    %201 = vst.msk [vmem:[%s199 + $0x8] sm:$0xff] %vm141, %v193
    %202 = vst.msk [vmem:[%s199 + $0x10] sm:$0x3f] %vm144, %v195
    %v203 = vld [vmem:[#allocation2] sm:$0xff]
    %v204 = vld [vmem:[#allocation2 + $0x8] sm:$0xff]
    %v205 = vld [vmem:[#allocation2 + $0x10] sm:$0x3f]
    %209 = vrot.lane.b32.xlu0 %v203, 124
    %v210 = vpop.permute.xlu0 %209
    %211 = vrot.lane.b32.xlu0 %v204, 124
    %v212 = vpop.permute.xlu0 %211
    %213 = vrot.lane.b32.xlu0 %v205, 124
    %v214 = vpop.permute.xlu0 %213
    %s218 = scalar_lea.vmem [#allocation3], 96
    %219 = vst.msk [vmem:[%s218] sm:$0xff] %vm141, %v210
    %220 = vst.msk [vmem:[%s218 + $0x8] sm:$0xff] %vm141, %v212
    %221 = vst.msk [vmem:[%s218 + $0x10] sm:$0x3f] %vm144, %v214
    %v222 = vld [vmem:[#allocation2] sm:$0xff]
    %v223 = vld [vmem:[#allocation2 + $0x8] sm:$0xff]
    %v224 = vld [vmem:[#allocation2 + $0x10] sm:$0x3f]
    %228 = vrot.lane.b32.xlu0 %v222, 123
    %v229 = vpop.permute.xlu0 %228
    %230 = vrot.lane.b32.xlu0 %v223, 123
    %v231 = vpop.permute.xlu0 %230
    %232 = vrot.lane.b32.xlu0 %v224, 123
    %v233 = vpop.permute.xlu0 %232
    %s237 = scalar_lea.vmem [#allocation3], 120
    %238 = vst.msk [vmem:[%s237] sm:$0xff] %vm141, %v229
    %239 = vst.msk [vmem:[%s237 + $0x8] sm:$0xff] %vm141, %v231
    %240 = vst.msk [vmem:[%s237 + $0x10] sm:$0x3f] %vm144, %v233
    %v241 = vld [vmem:[#allocation2] sm:$0xff]
    %v242 = vld [vmem:[#allocation2 + $0x8] sm:$0xff]
    %v243 = vld [vmem:[#allocation2 + $0x10] sm:$0x3f]
    %247 = vrot.lane.b32.xlu0 %v241, 122
    %v248 = vpop.permute.xlu0 %247
    %249 = vrot.lane.b32.xlu0 %v242, 122
    %v250 = vpop.permute.xlu0 %249
    %251 = vrot.lane.b32.xlu0 %v243, 122
    %v252 = vpop.permute.xlu0 %251
    %s256 = scalar_lea.vmem [#allocation3], 144
    %257 = vst.msk [vmem:[%s256] sm:$0xff] %vm141, %v248
    %258 = vst.msk [vmem:[%s256 + $0x8] sm:$0xff] %vm141, %v250
    %259 = vst.msk [vmem:[%s256 + $0x10] sm:$0x3f] %vm144, %v252
    %v260 = vld [vmem:[#allocation2 + $0x16] sm:$0xff]
    %v261 = vld [vmem:[#allocation2 + $0x1e] sm:$0xff]
    %v262 = vld [vmem:[#allocation2 + $0x26] sm:$0x3f]
    %s263 = scalar_lea.vmem [#allocation3], 168
    %264 = vst.msk [vmem:[%s263] sm:$0xff] %vm141, %v260
    %265 = vst.msk [vmem:[%s263 + $0x8] sm:$0xff] %vm141, %v261
    %266 = vst.msk [vmem:[%s263 + $0x10] sm:$0x3f] %vm144, %v262
    %v267 = vld [vmem:[#allocation2 + $0x16] sm:$0xff]
    %v268 = vld [vmem:[#allocation2 + $0x1e] sm:$0xff]
    %v269 = vld [vmem:[#allocation2 + $0x26] sm:$0x3f]
    %273 = vrot.lane.b32.xlu0 %v267, 127
    %v274 = vpop.permute.xlu0 %273
    %275 = vrot.lane.b32.xlu0 %v268, 127
    %v276 = vpop.permute.xlu0 %275
    %277 = vrot.lane.b32.xlu0 %v269, 127
    %v278 = vpop.permute.xlu0 %277
    %s282 = scalar_lea.vmem [#allocation3], 192
    %283 = vst.msk [vmem:[%s282] sm:$0xff] %vm141, %v274
    %284 = vst.msk [vmem:[%s282 + $0x8] sm:$0xff] %vm141, %v276
    %285 = vst.msk [vmem:[%s282 + $0x10] sm:$0x3f] %vm144, %v278
    %v286 = vld [vmem:[#allocation2 + $0x16] sm:$0xff]
    %v287 = vld [vmem:[#allocation2 + $0x1e] sm:$0xff]
    %v288 = vld [vmem:[#allocation2 + $0x26] sm:$0x3f]
    %292 = vrot.lane.b32.xlu0 %v286, 126
    %v293 = vpop.permute.xlu0 %292
    %294 = vrot.lane.b32.xlu0 %v287, 126
    %v295 = vpop.permute.xlu0 %294
    %296 = vrot.lane.b32.xlu0 %v288, 126
    %v297 = vpop.permute.xlu0 %296
    %s301 = scalar_lea.vmem [#allocation3], 216
    %302 = vst.msk [vmem:[%s301] sm:$0xff] %vm141, %v293
    %303 = vst.msk [vmem:[%s301 + $0x8] sm:$0xff] %vm141, %v295
    %304 = vst.msk [vmem:[%s301 + $0x10] sm:$0x3f] %vm144, %v297
    %v305 = vld [vmem:[#allocation2 + $0x16] sm:$0xff]
    %v306 = vld [vmem:[#allocation2 + $0x1e] sm:$0xff]
    %v307 = vld [vmem:[#allocation2 + $0x26] sm:$0x3f]
    %311 = vrot.lane.b32.xlu0 %v305, 125
    %v312 = vpop.permute.xlu0 %311
    %313 = vrot.lane.b32.xlu0 %v306, 125
    %v314 = vpop.permute.xlu0 %313
    %315 = vrot.lane.b32.xlu0 %v307, 125
    %v316 = vpop.permute.xlu0 %315
    %s320 = scalar_lea.vmem [#allocation3], 240
    %321 = vst.msk [vmem:[%s320] sm:$0xff] %vm141, %v312
    %322 = vst.msk [vmem:[%s320 + $0x8] sm:$0xff] %vm141, %v314
    %323 = vst.msk [vmem:[%s320 + $0x10] sm:$0x3f] %vm144, %v316
    %v324 = vld [vmem:[#allocation2 + $0x16] sm:$0xff]
    %v325 = vld [vmem:[#allocation2 + $0x1e] sm:$0xff]
    %v326 = vld [vmem:[#allocation2 + $0x26] sm:$0x3f]
    %330 = vrot.lane.b32.xlu0 %v324, 124
    %v331 = vpop.permute.xlu0 %330
    %332 = vrot.lane.b32.xlu0 %v325, 124
    %v333 = vpop.permute.xlu0 %332
    %334 = vrot.lane.b32.xlu0 %v326, 124
    %v335 = vpop.permute.xlu0 %334
    %s339 = scalar_lea.vmem [#allocation3], 264
    %340 = vst.msk [vmem:[%s339] sm:$0xff] %vm141, %v331
    %341 = vst.msk [vmem:[%s339 + $0x8] sm:$0xff] %vm141, %v333
    %342 = vst.msk [vmem:[%s339 + $0x10] sm:$0x3f] %vm144, %v335
    %v343 = vld [vmem:[#allocation2 + $0x16] sm:$0xff]
    %v344 = vld [vmem:[#allocation2 + $0x1e] sm:$0xff]
    %v345 = vld [vmem:[#allocation2 + $0x26] sm:$0x3f]
    %349 = vrot.lane.b32.xlu0 %v343, 123
    %v350 = vpop.permute.xlu0 %349
    %351 = vrot.lane.b32.xlu0 %v344, 123
    %v352 = vpop.permute.xlu0 %351
    %353 = vrot.lane.b32.xlu0 %v345, 123
    %v354 = vpop.permute.xlu0 %353
    %s358 = scalar_lea.vmem [#allocation3], 288
    %359 = vst.msk [vmem:[%s358] sm:$0xff] %vm141, %v350
    %360 = vst.msk [vmem:[%s358 + $0x8] sm:$0xff] %vm141, %v352
    %361 = vst.msk [vmem:[%s358 + $0x10] sm:$0x3f] %vm144, %v354
    %v362 = vld [vmem:[#allocation2 + $0x16] sm:$0xff]
    %v363 = vld [vmem:[#allocation2 + $0x1e] sm:$0xff]
    %v364 = vld [vmem:[#allocation2 + $0x26] sm:$0x3f]
    %368 = vrot.lane.b32.xlu0 %v362, 122
    %v369 = vpop.permute.xlu0 %368
    %370 = vrot.lane.b32.xlu0 %v363, 122
    %v371 = vpop.permute.xlu0 %370
    %372 = vrot.lane.b32.xlu0 %v364, 122
    %v373 = vpop.permute.xlu0 %372
    %s377 = scalar_lea.vmem [#allocation3], 312
    %378 = vst.msk [vmem:[%s377] sm:$0xff] %vm141, %v369
    %379 = vst.msk [vmem:[%s377 + $0x8] sm:$0xff] %vm141, %v371
    %380 = vst.msk [vmem:[%s377 + $0x10] sm:$0x3f] %vm144, %v373
    %s381 = sld [smem:[#allocation4]]
    %s382 = sld [smem:[#allocation4 + $0x1]]
    %s383 = sld [smem:[#allocation4 + $0x2]]
    %s384 = sld [smem:[#allocation4 + $0x3]]
    %s385 = sld [smem:[#allocation4 + $0x4]]
    %s386 = sld [smem:[#allocation4 + $0x5]]
    %s387 = sld [smem:[#allocation4 + $0x6]]
    %s388 = sld [smem:[#allocation4 + $0x7]]
    %s389 = sld [smem:[#allocation4 + $0x8]]
    %s390 = sld [smem:[#allocation4 + $0x9]]
    %s391 = sld [smem:[#allocation4 + $0xa]]
    %s392 = sld [smem:[#allocation4 + $0xb]]
    %s393 = sld [smem:[#allocation4 + $0xc]]
    %s394 = sld [smem:[#allocation4 + $0xd]]
    %s395 = sld [smem:[#allocation4 + $0xe]]
    %s396 = sld [smem:[#allocation4 + $0xf]]
    %s397 = sld [smem:[#allocation4 + $0x10]]
    %s398 = sld [smem:[#allocation4 + $0x11]]
    %s399 = sld [smem:[#allocation4 + $0x12]]
    %s400 = sld [smem:[#allocation4 + $0x13]]
    %s401 = sld [smem:[#allocation4 + $0x14]]
    %s402 = sld [smem:[#allocation4 + $0x15]]
    %s403 = sld [smem:[#allocation4 + $0x16]]
    %s404 = sld [smem:[#allocation4 + $0x17]]
    %s405 = sld [smem:[#allocation4 + $0x18]]
    %s406 = sld [smem:[#allocation4 + $0x19]]
    %s407 = sld [smem:[#allocation4 + $0x1a]]
    %s408 = sld [smem:[#allocation4 + $0x1b]]
    %s409 = sld [smem:[#allocation4 + $0x1c]]
    %s410 = sld [smem:[#allocation4 + $0x1d]]
    %s411 = sld [smem:[#allocation4 + $0x1e]]
    %s412 = sld [smem:[#allocation4 + $0x1f]]
    %s413 = sld [smem:[#allocation4 + $0x20]]
    %s414 = sld [smem:[#allocation4 + $0x21]]
    %s415 = sld [smem:[#allocation4 + $0x22]]
    %s416 = sld [smem:[#allocation4 + $0x23]]
    %s417 = sld [smem:[#allocation4 + $0x24]]
    %s418 = sld [smem:[#allocation4 + $0x25]]
    %s419 = sld [smem:[#allocation4 + $0x26]]
    %s420 = sld [smem:[#allocation4 + $0x27]]
    %s421 = sld [smem:[#allocation4 + $0x28]]
    %s422 = sld [smem:[#allocation4 + $0x29]]
    %s423 = sld [smem:[#allocation4 + $0x2a]]
    %s424 = sld [smem:[#allocation4 + $0x2b]]
    %s425 = sld [smem:[#allocation4 + $0x2c]]
    %s426 = sld [smem:[#allocation4 + $0x2d]]
    %s427 = sld [smem:[#allocation4 + $0x2e]]
    %s428 = sld [smem:[#allocation4 + $0x2f]]
    %s429 = sld [smem:[#allocation4 + $0x30]]
    %s430 = sld [smem:[#allocation4 + $0x31]]
    %s431 = sld [smem:[#allocation4 + $0x32]]
    %s432 = sld [smem:[#allocation4 + $0x33]]
    %s433 = sld [smem:[#allocation4 + $0x34]]
    %s434 = sld [smem:[#allocation4 + $0x35]]
    %s435 = sld [smem:[#allocation4 + $0x36]]
    %s436 = sld [smem:[#allocation4 + $0x37]]
    %s437 = sld [smem:[#allocation4 + $0x38]]
    %s438 = sld [smem:[#allocation4 + $0x39]]
    %s439 = sld [smem:[#allocation4 + $0x3a]]
    %s440 = sld [smem:[#allocation4 + $0x3b]]
    %s441 = sld [smem:[#allocation4 + $0x3c]]
    %s442 = sld [smem:[#allocation4 + $0x3d]]
    %s443 = sld [smem:[#allocation4 + $0x3e]]
    %s444 = sld [smem:[#allocation4 + $0x3f]]
    %s445 = sld [smem:[#allocation4 + $0x40]]
    %s446 = sld [smem:[#allocation4 + $0x41]]
    %s447 = sld [smem:[#allocation4 + $0x42]]
    %s448 = sld [smem:[#allocation4 + $0x43]]
    %s449 = sld [smem:[#allocation4 + $0x44]]
    %s450 = sld [smem:[#allocation4 + $0x45]]
    %s451 = sld [smem:[#allocation4 + $0x46]]
    %s452 = sld [smem:[#allocation4 + $0x47]]
    %s453 = sld [smem:[#allocation4 + $0x48]]
    %s454 = sld [smem:[#allocation4 + $0x49]]
    %s455 = sld [smem:[#allocation4 + $0x4a]]
    %s456 = sld [smem:[#allocation4 + $0x4b]]
    %s457 = sld [smem:[#allocation4 + $0x4c]]
    %s458 = sld [smem:[#allocation4 + $0x4d]]
    %s459 = sld [smem:[#allocation4 + $0x4e]]
    %s460 = sld [smem:[#allocation4 + $0x4f]]
    %s461 = sld [smem:[#allocation4 + $0x50]]
    %s462 = sld [smem:[#allocation4 + $0x51]]
    %s463 = sld [smem:[#allocation4 + $0x52]]
    %s464 = sld [smem:[#allocation4 + $0x53]]
    %s465 = sld [smem:[#allocation4 + $0x54]]
    %s466 = sld [smem:[#allocation4 + $0x55]]
    %s467 = sld [smem:[#allocation4 + $0x56]]
    %s468 = sld [smem:[#allocation4 + $0x57]]
    %s469 = sld [smem:[#allocation4 + $0x58]]
    %s470 = sld [smem:[#allocation4 + $0x59]]
    %s471 = sld [smem:[#allocation4 + $0x5a]]
    %s472 = sld [smem:[#allocation4 + $0x5b]]
    %s473 = sld [smem:[#allocation4 + $0x5c]]
    %s474 = sld [smem:[#allocation4 + $0x5d]]
    %s475 = sld [smem:[#allocation4 + $0x5e]]
    %s476 = sld [smem:[#allocation4 + $0x5f]]
    %s477 = sld [smem:[#allocation4 + $0x60]]
    %s478 = sld [smem:[#allocation4 + $0x61]]
    %v479 = vld [vmem:[#allocation3] sm:$0xff]
    %v480 = vld [vmem:[#allocation3 + $0x8] sm:$0xff]
    %v481 = vstv %s381
    %v482 = vmul.f32 %v481, %v479
    %v483 = vmul.f32 %v481, %v480
    %v484 = vadd.f32 %v482, 0.0
    %v485 = vadd.f32 %v483, 0.0
    %v486 = vld [vmem:[%s161] sm:$0xff]
    %v487 = vld [vmem:[%s161 + $0x8] sm:$0xff]
    %v488 = vstv %s382
    %v489 = vmul.f32 %v488, %v486
    %v490 = vmul.f32 %v488, %v487
    %v491 = vadd.f32 %v484, %v489
    %v492 = vadd.f32 %v485, %v490
    %v493 = vld [vmem:[%s180] sm:$0xff]
    %v494 = vld [vmem:[%s180 + $0x8] sm:$0xff]
    %v495 = vstv %s383
    %v496 = vmul.f32 %v495, %v493
    %v497 = vmul.f32 %v495, %v494
    %v498 = vadd.f32 %v491, %v496
    %v499 = vadd.f32 %v492, %v497
    %v500 = vld [vmem:[%s199] sm:$0xff]
    %v501 = vld [vmem:[%s199 + $0x8] sm:$0xff]
    %v502 = vstv %s384
    %v503 = vmul.f32 %v502, %v500
    %v504 = vmul.f32 %v502, %v501
    %v505 = vadd.f32 %v498, %v503
    %v506 = vadd.f32 %v499, %v504
    %v507 = vld [vmem:[%s218] sm:$0xff]
    %v508 = vld [vmem:[%s218 + $0x8] sm:$0xff]
    %v509 = vstv %s385
    %v510 = vmul.f32 %v509, %v507
    %v511 = vmul.f32 %v509, %v508
    %v512 = vadd.f32 %v505, %v510
    %v513 = vadd.f32 %v506, %v511
    %v514 = vld [vmem:[%s237] sm:$0xff]
    %v515 = vld [vmem:[%s237 + $0x8] sm:$0xff]
    %v516 = vstv %s386
    %v517 = vmul.f32 %v516, %v514
    %v518 = vmul.f32 %v516, %v515
    %v519 = vadd.f32 %v512, %v517
    %v520 = vadd.f32 %v513, %v518
    %v521 = vld [vmem:[%s256] sm:$0xff]
    %v522 = vld [vmem:[%s256 + $0x8] sm:$0xff]
    %v523 = vstv %s387
    %v524 = vmul.f32 %v523, %v521
    %v525 = vmul.f32 %v523, %v522
    %v526 = vadd.f32 %v519, %v524
    %v527 = vadd.f32 %v520, %v525
    %v528 = vld [vmem:[#allocation3 + $0x1] sm:$0xff]
    %v529 = vld [vmem:[#allocation3 + $0x9] sm:$0xff]
    %v530 = vstv %s388
    %v531 = vmul.f32 %v530, %v528
    %v532 = vmul.f32 %v530, %v529
    %v533 = vadd.f32 %v526, %v531
    %v534 = vadd.f32 %v527, %v532
    %v535 = vld [vmem:[%s161 + $0x1] sm:$0xff]
    %v536 = vld [vmem:[%s161 + $0x9] sm:$0xff]
    %v537 = vstv %s389
    %v538 = vmul.f32 %v537, %v535
    %v539 = vmul.f32 %v537, %v536
    %v540 = vadd.f32 %v533, %v538
    %v541 = vadd.f32 %v534, %v539
    %v542 = vld [vmem:[%s180 + $0x1] sm:$0xff]
    %v543 = vld [vmem:[%s180 + $0x9] sm:$0xff]
    %v544 = vstv %s390
    %v545 = vmul.f32 %v544, %v542
    %v546 = vmul.f32 %v544, %v543
    %v547 = vadd.f32 %v540, %v545
    %v548 = vadd.f32 %v541, %v546
    %v549 = vld [vmem:[%s199 + $0x1] sm:$0xff]
    %v550 = vld [vmem:[%s199 + $0x9] sm:$0xff]
    %v551 = vstv %s391
    %v552 = vmul.f32 %v551, %v549
    %v553 = vmul.f32 %v551, %v550
    %v554 = vadd.f32 %v547, %v552
    %v555 = vadd.f32 %v548, %v553
    %v556 = vld [vmem:[%s218 + $0x1] sm:$0xff]
    %v557 = vld [vmem:[%s218 + $0x9] sm:$0xff]
    %v558 = vstv %s392
    %v559 = vmul.f32 %v558, %v556
    %v560 = vmul.f32 %v558, %v557
    %v561 = vadd.f32 %v554, %v559
    %v562 = vadd.f32 %v555, %v560
    %v563 = vld [vmem:[%s237 + $0x1] sm:$0xff]
    %v564 = vld [vmem:[%s237 + $0x9] sm:$0xff]
    %v565 = vstv %s393
    %v566 = vmul.f32 %v565, %v563
    %v567 = vmul.f32 %v565, %v564
    %v568 = vadd.f32 %v561, %v566
    %v569 = vadd.f32 %v562, %v567
    %v570 = vld [vmem:[%s256 + $0x1] sm:$0xff]
    %v571 = vld [vmem:[%s256 + $0x9] sm:$0xff]
    %v572 = vstv %s394
    %v573 = vmul.f32 %v572, %v570
    %v574 = vmul.f32 %v572, %v571
    %v575 = vadd.f32 %v568, %v573
    %v576 = vadd.f32 %v569, %v574
    %v577 = vld [vmem:[#allocation3 + $0x2] sm:$0xff]
    %v578 = vld [vmem:[#allocation3 + $0xa] sm:$0xff]
    %v579 = vstv %s395
    %v580 = vmul.f32 %v579, %v577
    %v581 = vmul.f32 %v579, %v578
    %v582 = vadd.f32 %v575, %v580
    %v583 = vadd.f32 %v576, %v581
    %v584 = vld [vmem:[%s161 + $0x2] sm:$0xff]
    %v585 = vld [vmem:[%s161 + $0xa] sm:$0xff]
    %v586 = vstv %s396
    %v587 = vmul.f32 %v586, %v584
    %v588 = vmul.f32 %v586, %v585
    %v589 = vadd.f32 %v582, %v587
    %v590 = vadd.f32 %v583, %v588
    %v591 = vld [vmem:[%s180 + $0x2] sm:$0xff]
    %v592 = vld [vmem:[%s180 + $0xa] sm:$0xff]
    %v593 = vstv %s397
    %v594 = vmul.f32 %v593, %v591
    %v595 = vmul.f32 %v593, %v592
    %v596 = vadd.f32 %v589, %v594
    %v597 = vadd.f32 %v590, %v595
    %v598 = vld [vmem:[%s199 + $0x2] sm:$0xff]
    %v599 = vld [vmem:[%s199 + $0xa] sm:$0xff]
    %v600 = vstv %s398
    %v601 = vmul.f32 %v600, %v598
    %v602 = vmul.f32 %v600, %v599
    %v603 = vadd.f32 %v596, %v601
    %v604 = vadd.f32 %v597, %v602
    %v605 = vld [vmem:[%s218 + $0x2] sm:$0xff]
    %v606 = vld [vmem:[%s218 + $0xa] sm:$0xff]
    %v607 = vstv %s399
    %v608 = vmul.f32 %v607, %v605
    %v609 = vmul.f32 %v607, %v606
    %v610 = vadd.f32 %v603, %v608
    %v611 = vadd.f32 %v604, %v609
    %v612 = vld [vmem:[%s237 + $0x2] sm:$0xff]
    %v613 = vld [vmem:[%s237 + $0xa] sm:$0xff]
    %v614 = vstv %s400
    %v615 = vmul.f32 %v614, %v612
    %v616 = vmul.f32 %v614, %v613
    %v617 = vadd.f32 %v610, %v615
    %v618 = vadd.f32 %v611, %v616
    %v619 = vld [vmem:[%s256 + $0x2] sm:$0xff]
    %v620 = vld [vmem:[%s256 + $0xa] sm:$0xff]
    %v621 = vstv %s401
    %v622 = vmul.f32 %v621, %v619
    %v623 = vmul.f32 %v621, %v620
    %v624 = vadd.f32 %v617, %v622
    %v625 = vadd.f32 %v618, %v623
    %v626 = vld [vmem:[#allocation3 + $0x3] sm:$0xff]
    %v627 = vld [vmem:[#allocation3 + $0xb] sm:$0xff]
    %v628 = vstv %s402
    %v629 = vmul.f32 %v628, %v626
    %v630 = vmul.f32 %v628, %v627
    %v631 = vadd.f32 %v624, %v629
    %v632 = vadd.f32 %v625, %v630
    %v633 = vld [vmem:[%s161 + $0x3] sm:$0xff]
    %v634 = vld [vmem:[%s161 + $0xb] sm:$0xff]
    %v635 = vstv %s403
    %v636 = vmul.f32 %v635, %v633
    %v637 = vmul.f32 %v635, %v634
    %v638 = vadd.f32 %v631, %v636
    %v639 = vadd.f32 %v632, %v637
    %v640 = vld [vmem:[%s180 + $0x3] sm:$0xff]
    %v641 = vld [vmem:[%s180 + $0xb] sm:$0xff]
    %v642 = vstv %s404
    %v643 = vmul.f32 %v642, %v640
    %v644 = vmul.f32 %v642, %v641
    %v645 = vadd.f32 %v638, %v643
    %v646 = vadd.f32 %v639, %v644
    %v647 = vld [vmem:[%s199 + $0x3] sm:$0xff]
    %v648 = vld [vmem:[%s199 + $0xb] sm:$0xff]
    %v649 = vstv %s405
    %v650 = vmul.f32 %v649, %v647
    %v651 = vmul.f32 %v649, %v648
    %v652 = vadd.f32 %v645, %v650
    %v653 = vadd.f32 %v646, %v651
    %v654 = vld [vmem:[%s218 + $0x3] sm:$0xff]
    %v655 = vld [vmem:[%s218 + $0xb] sm:$0xff]
    %v656 = vstv %s406
    %v657 = vmul.f32 %v656, %v654
    %v658 = vmul.f32 %v656, %v655
    %v659 = vadd.f32 %v652, %v657
    %v660 = vadd.f32 %v653, %v658
    %v661 = vld [vmem:[%s237 + $0x3] sm:$0xff]
    %v662 = vld [vmem:[%s237 + $0xb] sm:$0xff]
    %v663 = vstv %s407
    %v664 = vmul.f32 %v663, %v661
    %v665 = vmul.f32 %v663, %v662
    %v666 = vadd.f32 %v659, %v664
    %v667 = vadd.f32 %v660, %v665
    %v668 = vld [vmem:[%s256 + $0x3] sm:$0xff]
    %v669 = vld [vmem:[%s256 + $0xb] sm:$0xff]
    %v670 = vstv %s408
    %v671 = vmul.f32 %v670, %v668
    %v672 = vmul.f32 %v670, %v669
    %v673 = vadd.f32 %v666, %v671
    %v674 = vadd.f32 %v667, %v672
    %v675 = vld [vmem:[#allocation3 + $0x4] sm:$0xff]
    %v676 = vld [vmem:[#allocation3 + $0xc] sm:$0xff]
    %v677 = vstv %s409
    %v678 = vmul.f32 %v677, %v675
    %v679 = vmul.f32 %v677, %v676
    %v680 = vadd.f32 %v673, %v678
    %v681 = vadd.f32 %v674, %v679
    %v682 = vld [vmem:[%s161 + $0x4] sm:$0xff]
    %v683 = vld [vmem:[%s161 + $0xc] sm:$0xff]
    %v684 = vstv %s410
    %v685 = vmul.f32 %v684, %v682
    %v686 = vmul.f32 %v684, %v683
    %v687 = vadd.f32 %v680, %v685
    %v688 = vadd.f32 %v681, %v686
    %v689 = vld [vmem:[%s180 + $0x4] sm:$0xff]
    %v690 = vld [vmem:[%s180 + $0xc] sm:$0xff]
    %v691 = vstv %s411
    %v692 = vmul.f32 %v691, %v689
    %v693 = vmul.f32 %v691, %v690
    %v694 = vadd.f32 %v687, %v692
    %v695 = vadd.f32 %v688, %v693
    %v696 = vld [vmem:[%s199 + $0x4] sm:$0xff]
    %v697 = vld [vmem:[%s199 + $0xc] sm:$0xff]
    %v698 = vstv %s412
    %v699 = vmul.f32 %v698, %v696
    %v700 = vmul.f32 %v698, %v697
    %v701 = vadd.f32 %v694, %v699
    %v702 = vadd.f32 %v695, %v700
    %v703 = vld [vmem:[%s218 + $0x4] sm:$0xff]
    %v704 = vld [vmem:[%s218 + $0xc] sm:$0xff]
    %v705 = vstv %s413
    %v706 = vmul.f32 %v705, %v703
    %v707 = vmul.f32 %v705, %v704
    %v708 = vadd.f32 %v701, %v706
    %v709 = vadd.f32 %v702, %v707
    %v710 = vld [vmem:[%s237 + $0x4] sm:$0xff]
    %v711 = vld [vmem:[%s237 + $0xc] sm:$0xff]
    %v712 = vstv %s414
    %v713 = vmul.f32 %v712, %v710
    %v714 = vmul.f32 %v712, %v711
    %v715 = vadd.f32 %v708, %v713
    %v716 = vadd.f32 %v709, %v714
    %v717 = vld [vmem:[%s256 + $0x4] sm:$0xff]
    %v718 = vld [vmem:[%s256 + $0xc] sm:$0xff]
    %v719 = vstv %s415
    %v720 = vmul.f32 %v719, %v717
    %v721 = vmul.f32 %v719, %v718
    %v722 = vadd.f32 %v715, %v720
    %v723 = vadd.f32 %v716, %v721
    %v724 = vld [vmem:[#allocation3 + $0x5] sm:$0xff]
    %v725 = vld [vmem:[#allocation3 + $0xd] sm:$0xff]
    %v726 = vstv %s416
    %v727 = vmul.f32 %v726, %v724
    %v728 = vmul.f32 %v726, %v725
    %v729 = vadd.f32 %v722, %v727
    %v730 = vadd.f32 %v723, %v728
    %v731 = vld [vmem:[%s161 + $0x5] sm:$0xff]
    %v732 = vld [vmem:[%s161 + $0xd] sm:$0xff]
    %v733 = vstv %s417
    %v734 = vmul.f32 %v733, %v731
    %v735 = vmul.f32 %v733, %v732
    %v736 = vadd.f32 %v729, %v734
    %v737 = vadd.f32 %v730, %v735
    %v738 = vld [vmem:[%s180 + $0x5] sm:$0xff]
    %v739 = vld [vmem:[%s180 + $0xd] sm:$0xff]
    %v740 = vstv %s418
    %v741 = vmul.f32 %v740, %v738
    %v742 = vmul.f32 %v740, %v739
    %v743 = vadd.f32 %v736, %v741
    %v744 = vadd.f32 %v737, %v742
    %v745 = vld [vmem:[%s199 + $0x5] sm:$0xff]
    %v746 = vld [vmem:[%s199 + $0xd] sm:$0xff]
    %v747 = vstv %s419
    %v748 = vmul.f32 %v747, %v745
    %v749 = vmul.f32 %v747, %v746
    %v750 = vadd.f32 %v743, %v748
    %v751 = vadd.f32 %v744, %v749
    %v752 = vld [vmem:[%s218 + $0x5] sm:$0xff]
    %v753 = vld [vmem:[%s218 + $0xd] sm:$0xff]
    %v754 = vstv %s420
    %v755 = vmul.f32 %v754, %v752
    %v756 = vmul.f32 %v754, %v753
    %v757 = vadd.f32 %v750, %v755
    %v758 = vadd.f32 %v751, %v756
    %v759 = vld [vmem:[%s237 + $0x5] sm:$0xff]
    %v760 = vld [vmem:[%s237 + $0xd] sm:$0xff]
    %v761 = vstv %s421
    %v762 = vmul.f32 %v761, %v759
    %v763 = vmul.f32 %v761, %v760
    %v764 = vadd.f32 %v757, %v762
    %v765 = vadd.f32 %v758, %v763
    %v766 = vld [vmem:[%s256 + $0x5] sm:$0xff]
    %v767 = vld [vmem:[%s256 + $0xd] sm:$0xff]
    %v768 = vstv %s422
    %v769 = vmul.f32 %v768, %v766
    %v770 = vmul.f32 %v768, %v767
    %v771 = vadd.f32 %v764, %v769
    %v772 = vadd.f32 %v765, %v770
    %v773 = vld [vmem:[#allocation3 + $0x6] sm:$0xff]
    %v774 = vld [vmem:[#allocation3 + $0xe] sm:$0xff]
    %v775 = vstv %s423
    %v776 = vmul.f32 %v775, %v773
    %v777 = vmul.f32 %v775, %v774
    %v778 = vadd.f32 %v771, %v776
    %v779 = vadd.f32 %v772, %v777
    %v780 = vld [vmem:[%s161 + $0x6] sm:$0xff]
    %v781 = vld [vmem:[%s161 + $0xe] sm:$0xff]
    %v782 = vstv %s424
    %v783 = vmul.f32 %v782, %v780
    %v784 = vmul.f32 %v782, %v781
    %v785 = vadd.f32 %v778, %v783
    %v786 = vadd.f32 %v779, %v784
    %v787 = vld [vmem:[%s180 + $0x6] sm:$0xff]
    %v788 = vld [vmem:[%s180 + $0xe] sm:$0xff]
    %v789 = vstv %s425
    %v790 = vmul.f32 %v789, %v787
    %v791 = vmul.f32 %v789, %v788
    %v792 = vadd.f32 %v785, %v790
    %v793 = vadd.f32 %v786, %v791
    %v794 = vld [vmem:[%s199 + $0x6] sm:$0xff]
    %v795 = vld [vmem:[%s199 + $0xe] sm:$0xff]
    %v796 = vstv %s426
    %v797 = vmul.f32 %v796, %v794
    %v798 = vmul.f32 %v796, %v795
    %v799 = vadd.f32 %v792, %v797
    %v800 = vadd.f32 %v793, %v798
    %v801 = vld [vmem:[%s218 + $0x6] sm:$0xff]
    %v802 = vld [vmem:[%s218 + $0xe] sm:$0xff]
    %v803 = vstv %s427
    %v804 = vmul.f32 %v803, %v801
    %v805 = vmul.f32 %v803, %v802
    %v806 = vadd.f32 %v799, %v804
    %v807 = vadd.f32 %v800, %v805
    %v808 = vld [vmem:[%s237 + $0x6] sm:$0xff]
    %v809 = vld [vmem:[%s237 + $0xe] sm:$0xff]
    %v810 = vstv %s428
    %v811 = vmul.f32 %v810, %v808
    %v812 = vmul.f32 %v810, %v809
    %v813 = vadd.f32 %v806, %v811
    %v814 = vadd.f32 %v807, %v812
    %v815 = vld [vmem:[%s256 + $0x6] sm:$0xff]
    %v816 = vld [vmem:[%s256 + $0xe] sm:$0xff]
    %v817 = vstv %s429
    %v818 = vmul.f32 %v817, %v815
    %v819 = vmul.f32 %v817, %v816
    %v820 = vadd.f32 %v813, %v818
    %v821 = vadd.f32 %v814, %v819
    %v822 = vld [vmem:[%s263] sm:$0xff]
    %v823 = vld [vmem:[%s263 + $0x8] sm:$0xff]
    %v824 = vstv %s430
    %v825 = vmul.f32 %v824, %v822
    %v826 = vmul.f32 %v824, %v823
    %v827 = vadd.f32 %v820, %v825
    %v828 = vadd.f32 %v821, %v826
    %v829 = vld [vmem:[%s282] sm:$0xff]
    %v830 = vld [vmem:[%s282 + $0x8] sm:$0xff]
    %v831 = vstv %s431
    %v832 = vmul.f32 %v831, %v829
    %v833 = vmul.f32 %v831, %v830
    %v834 = vadd.f32 %v827, %v832
    %v835 = vadd.f32 %v828, %v833
    %v836 = vld [vmem:[%s301] sm:$0xff]
    %v837 = vld [vmem:[%s301 + $0x8] sm:$0xff]
    %v838 = vstv %s432
    %v839 = vmul.f32 %v838, %v836
    %v840 = vmul.f32 %v838, %v837
    %v841 = vadd.f32 %v834, %v839
    %v842 = vadd.f32 %v835, %v840
    %v843 = vld [vmem:[%s320] sm:$0xff]
    %v844 = vld [vmem:[%s320 + $0x8] sm:$0xff]
    %v845 = vstv %s433
    %v846 = vmul.f32 %v845, %v843
    %v847 = vmul.f32 %v845, %v844
    %v848 = vadd.f32 %v841, %v846
    %v849 = vadd.f32 %v842, %v847
    %v850 = vld [vmem:[%s339] sm:$0xff]
    %v851 = vld [vmem:[%s339 + $0x8] sm:$0xff]
    %v852 = vstv %s434
    %v853 = vmul.f32 %v852, %v850
    %v854 = vmul.f32 %v852, %v851
    %v855 = vadd.f32 %v848, %v853
    %v856 = vadd.f32 %v849, %v854
    %v857 = vld [vmem:[%s358] sm:$0xff]
    %v858 = vld [vmem:[%s358 + $0x8] sm:$0xff]
    %v859 = vstv %s435
    %v860 = vmul.f32 %v859, %v857
    %v861 = vmul.f32 %v859, %v858
    %v862 = vadd.f32 %v855, %v860
    %v863 = vadd.f32 %v856, %v861
    %v864 = vld [vmem:[%s377] sm:$0xff]
    %v865 = vld [vmem:[%s377 + $0x8] sm:$0xff]
    %v866 = vstv %s436
    %v867 = vmul.f32 %v866, %v864
    %v868 = vmul.f32 %v866, %v865
    %v869 = vadd.f32 %v862, %v867
    %v870 = vadd.f32 %v863, %v868
    %v871 = vld [vmem:[%s263 + $0x1] sm:$0xff]
    %v872 = vld [vmem:[%s263 + $0x9] sm:$0xff]
    %v873 = vstv %s437
    %v874 = vmul.f32 %v873, %v871
    %v875 = vmul.f32 %v873, %v872
    %v876 = vadd.f32 %v869, %v874
    %v877 = vadd.f32 %v870, %v875
    %v878 = vld [vmem:[%s282 + $0x1] sm:$0xff]
    %v879 = vld [vmem:[%s282 + $0x9] sm:$0xff]
    %v880 = vstv %s438
    %v881 = vmul.f32 %v880, %v878
    %v882 = vmul.f32 %v880, %v879
    %v883 = vadd.f32 %v876, %v881
    %v884 = vadd.f32 %v877, %v882
    %v885 = vld [vmem:[%s301 + $0x1] sm:$0xff]
    %v886 = vld [vmem:[%s301 + $0x9] sm:$0xff]
    %v887 = vstv %s439
    %v888 = vmul.f32 %v887, %v885
    %v889 = vmul.f32 %v887, %v886
    %v890 = vadd.f32 %v883, %v888
    %v891 = vadd.f32 %v884, %v889
    %v892 = vld [vmem:[%s320 + $0x1] sm:$0xff]
    %v893 = vld [vmem:[%s320 + $0x9] sm:$0xff]
    %v894 = vstv %s440
    %v895 = vmul.f32 %v894, %v892
    %v896 = vmul.f32 %v894, %v893
    %v897 = vadd.f32 %v890, %v895
    %v898 = vadd.f32 %v891, %v896
    %v899 = vld [vmem:[%s339 + $0x1] sm:$0xff]
    %v900 = vld [vmem:[%s339 + $0x9] sm:$0xff]
    %v901 = vstv %s441
    %v902 = vmul.f32 %v901, %v899
    %v903 = vmul.f32 %v901, %v900
    %v904 = vadd.f32 %v897, %v902
    %v905 = vadd.f32 %v898, %v903
    %v906 = vld [vmem:[%s358 + $0x1] sm:$0xff]
    %v907 = vld [vmem:[%s358 + $0x9] sm:$0xff]
    %v908 = vstv %s442
    %v909 = vmul.f32 %v908, %v906
    %v910 = vmul.f32 %v908, %v907
    %v911 = vadd.f32 %v904, %v909
    %v912 = vadd.f32 %v905, %v910
    %v913 = vld [vmem:[%s377 + $0x1] sm:$0xff]
    %v914 = vld [vmem:[%s377 + $0x9] sm:$0xff]
    %v915 = vstv %s443
    %v916 = vmul.f32 %v915, %v913
    %v917 = vmul.f32 %v915, %v914
    %v918 = vadd.f32 %v911, %v916
    %v919 = vadd.f32 %v912, %v917
    %v920 = vld [vmem:[%s263 + $0x2] sm:$0xff]
    %v921 = vld [vmem:[%s263 + $0xa] sm:$0xff]
    %v922 = vstv %s444
    %v923 = vmul.f32 %v922, %v920
    %v924 = vmul.f32 %v922, %v921
    %v925 = vadd.f32 %v918, %v923
    %v926 = vadd.f32 %v919, %v924
    %v927 = vld [vmem:[%s282 + $0x2] sm:$0xff]
    %v928 = vld [vmem:[%s282 + $0xa] sm:$0xff]
    %v929 = vstv %s445
    %v930 = vmul.f32 %v929, %v927
    %v931 = vmul.f32 %v929, %v928
    %v932 = vadd.f32 %v925, %v930
    %v933 = vadd.f32 %v926, %v931
    %v934 = vld [vmem:[%s301 + $0x2] sm:$0xff]
    %v935 = vld [vmem:[%s301 + $0xa] sm:$0xff]
    %v936 = vstv %s446
    %v937 = vmul.f32 %v936, %v934
    %v938 = vmul.f32 %v936, %v935
    %v939 = vadd.f32 %v932, %v937
    %v940 = vadd.f32 %v933, %v938
    %v941 = vld [vmem:[%s320 + $0x2] sm:$0xff]
    %v942 = vld [vmem:[%s320 + $0xa] sm:$0xff]
    %v943 = vstv %s447
    %v944 = vmul.f32 %v943, %v941
    %v945 = vmul.f32 %v943, %v942
    %v946 = vadd.f32 %v939, %v944
    %v947 = vadd.f32 %v940, %v945
    %v948 = vld [vmem:[%s339 + $0x2] sm:$0xff]
    %v949 = vld [vmem:[%s339 + $0xa] sm:$0xff]
    %v950 = vstv %s448
    %v951 = vmul.f32 %v950, %v948
    %v952 = vmul.f32 %v950, %v949
    %v953 = vadd.f32 %v946, %v951
    %v954 = vadd.f32 %v947, %v952
    %v955 = vld [vmem:[%s358 + $0x2] sm:$0xff]
    %v956 = vld [vmem:[%s358 + $0xa] sm:$0xff]
    %v957 = vstv %s449
    %v958 = vmul.f32 %v957, %v955
    %v959 = vmul.f32 %v957, %v956
    %v960 = vadd.f32 %v953, %v958
    %v961 = vadd.f32 %v954, %v959
    %v962 = vld [vmem:[%s377 + $0x2] sm:$0xff]
    %v963 = vld [vmem:[%s377 + $0xa] sm:$0xff]
    %v964 = vstv %s450
    %v965 = vmul.f32 %v964, %v962
    %v966 = vmul.f32 %v964, %v963
    %v967 = vadd.f32 %v960, %v965
    %v968 = vadd.f32 %v961, %v966
    %v969 = vld [vmem:[%s263 + $0x3] sm:$0xff]
    %v970 = vld [vmem:[%s263 + $0xb] sm:$0xff]
    %v971 = vstv %s451
    %v972 = vmul.f32 %v971, %v969
    %v973 = vmul.f32 %v971, %v970
    %v974 = vadd.f32 %v967, %v972
    %v975 = vadd.f32 %v968, %v973
    %v976 = vld [vmem:[%s282 + $0x3] sm:$0xff]
    %v977 = vld [vmem:[%s282 + $0xb] sm:$0xff]
    %v978 = vstv %s452
    %v979 = vmul.f32 %v978, %v976
    %v980 = vmul.f32 %v978, %v977
    %v981 = vadd.f32 %v974, %v979
    %v982 = vadd.f32 %v975, %v980
    %v983 = vld [vmem:[%s301 + $0x3] sm:$0xff]
    %v984 = vld [vmem:[%s301 + $0xb] sm:$0xff]
    %v985 = vstv %s453
    %v986 = vmul.f32 %v985, %v983
    %v987 = vmul.f32 %v985, %v984
    %v988 = vadd.f32 %v981, %v986
    %v989 = vadd.f32 %v982, %v987
    %v990 = vld [vmem:[%s320 + $0x3] sm:$0xff]
    %v991 = vld [vmem:[%s320 + $0xb] sm:$0xff]
    %v992 = vstv %s454
    %v993 = vmul.f32 %v992, %v990
    %v994 = vmul.f32 %v992, %v991
    %v995 = vadd.f32 %v988, %v993
    %v996 = vadd.f32 %v989, %v994
    %v997 = vld [vmem:[%s339 + $0x3] sm:$0xff]
    %v998 = vld [vmem:[%s339 + $0xb] sm:$0xff]
    %v999 = vstv %s455
    %v1000 = vmul.f32 %v999, %v997
    %v1001 = vmul.f32 %v999, %v998
    %v1002 = vadd.f32 %v995, %v1000
    %v1003 = vadd.f32 %v996, %v1001
    %v1004 = vld [vmem:[%s358 + $0x3] sm:$0xff]
    %v1005 = vld [vmem:[%s358 + $0xb] sm:$0xff]
    %v1006 = vstv %s456
    %v1007 = vmul.f32 %v1006, %v1004
    %v1008 = vmul.f32 %v1006, %v1005
    %v1009 = vadd.f32 %v1002, %v1007
    %v1010 = vadd.f32 %v1003, %v1008
    %v1011 = vld [vmem:[%s377 + $0x3] sm:$0xff]
    %v1012 = vld [vmem:[%s377 + $0xb] sm:$0xff]
    %v1013 = vstv %s457
    %v1014 = vmul.f32 %v1013, %v1011
    %v1015 = vmul.f32 %v1013, %v1012
    %v1016 = vadd.f32 %v1009, %v1014
    %v1017 = vadd.f32 %v1010, %v1015
    %v1018 = vld [vmem:[%s263 + $0x4] sm:$0xff]
    %v1019 = vld [vmem:[%s263 + $0xc] sm:$0xff]
    %v1020 = vstv %s458
    %v1021 = vmul.f32 %v1020, %v1018
    %v1022 = vmul.f32 %v1020, %v1019
    %v1023 = vadd.f32 %v1016, %v1021
    %v1024 = vadd.f32 %v1017, %v1022
    %v1025 = vld [vmem:[%s282 + $0x4] sm:$0xff]
    %v1026 = vld [vmem:[%s282 + $0xc] sm:$0xff]
    %v1027 = vstv %s459
    %v1028 = vmul.f32 %v1027, %v1025
    %v1029 = vmul.f32 %v1027, %v1026
    %v1030 = vadd.f32 %v1023, %v1028
    %v1031 = vadd.f32 %v1024, %v1029
    %v1032 = vld [vmem:[%s301 + $0x4] sm:$0xff]
    %v1033 = vld [vmem:[%s301 + $0xc] sm:$0xff]
    %v1034 = vstv %s460
    %v1035 = vmul.f32 %v1034, %v1032
    %v1036 = vmul.f32 %v1034, %v1033
    %v1037 = vadd.f32 %v1030, %v1035
    %v1038 = vadd.f32 %v1031, %v1036
    %v1039 = vld [vmem:[%s320 + $0x4] sm:$0xff]
    %v1040 = vld [vmem:[%s320 + $0xc] sm:$0xff]
    %v1041 = vstv %s461
    %v1042 = vmul.f32 %v1041, %v1039
    %v1043 = vmul.f32 %v1041, %v1040
    %v1044 = vadd.f32 %v1037, %v1042
    %v1045 = vadd.f32 %v1038, %v1043
    %v1046 = vld [vmem:[%s339 + $0x4] sm:$0xff]
    %v1047 = vld [vmem:[%s339 + $0xc] sm:$0xff]
    %v1048 = vstv %s462
    %v1049 = vmul.f32 %v1048, %v1046
    %v1050 = vmul.f32 %v1048, %v1047
    %v1051 = vadd.f32 %v1044, %v1049
    %v1052 = vadd.f32 %v1045, %v1050
    %v1053 = vld [vmem:[%s358 + $0x4] sm:$0xff]
    %v1054 = vld [vmem:[%s358 + $0xc] sm:$0xff]
    %v1055 = vstv %s463
    %v1056 = vmul.f32 %v1055, %v1053
    %v1057 = vmul.f32 %v1055, %v1054
    %v1058 = vadd.f32 %v1051, %v1056
    %v1059 = vadd.f32 %v1052, %v1057
    %v1060 = vld [vmem:[%s377 + $0x4] sm:$0xff]
    %v1061 = vld [vmem:[%s377 + $0xc] sm:$0xff]
    %v1062 = vstv %s464
    %v1063 = vmul.f32 %v1062, %v1060
    %v1064 = vmul.f32 %v1062, %v1061
    %v1065 = vadd.f32 %v1058, %v1063
    %v1066 = vadd.f32 %v1059, %v1064
    %v1067 = vld [vmem:[%s263 + $0x5] sm:$0xff]
    %v1068 = vld [vmem:[%s263 + $0xd] sm:$0xff]
    %v1069 = vstv %s465
    %v1070 = vmul.f32 %v1069, %v1067
    %v1071 = vmul.f32 %v1069, %v1068
    %v1072 = vadd.f32 %v1065, %v1070
    %v1073 = vadd.f32 %v1066, %v1071
    %v1074 = vld [vmem:[%s282 + $0x5] sm:$0xff]
    %v1075 = vld [vmem:[%s282 + $0xd] sm:$0xff]
    %v1076 = vstv %s466
    %v1077 = vmul.f32 %v1076, %v1074
    %v1078 = vmul.f32 %v1076, %v1075
    %v1079 = vadd.f32 %v1072, %v1077
    %v1080 = vadd.f32 %v1073, %v1078
    %v1081 = vld [vmem:[%s301 + $0x5] sm:$0xff]
    %v1082 = vld [vmem:[%s301 + $0xd] sm:$0xff]
    %v1083 = vstv %s467
    %v1084 = vmul.f32 %v1083, %v1081
    %v1085 = vmul.f32 %v1083, %v1082
    %v1086 = vadd.f32 %v1079, %v1084
    %v1087 = vadd.f32 %v1080, %v1085
    %v1088 = vld [vmem:[%s320 + $0x5] sm:$0xff]
    %v1089 = vld [vmem:[%s320 + $0xd] sm:$0xff]
    %v1090 = vstv %s468
    %v1091 = vmul.f32 %v1090, %v1088
    %v1092 = vmul.f32 %v1090, %v1089
    %v1093 = vadd.f32 %v1086, %v1091
    %v1094 = vadd.f32 %v1087, %v1092
    %v1095 = vld [vmem:[%s339 + $0x5] sm:$0xff]
    %v1096 = vld [vmem:[%s339 + $0xd] sm:$0xff]
    %v1097 = vstv %s469
    %v1098 = vmul.f32 %v1097, %v1095
    %v1099 = vmul.f32 %v1097, %v1096
    %v1100 = vadd.f32 %v1093, %v1098
    %v1101 = vadd.f32 %v1094, %v1099
    %v1102 = vld [vmem:[%s358 + $0x5] sm:$0xff]
    %v1103 = vld [vmem:[%s358 + $0xd] sm:$0xff]
    %v1104 = vstv %s470
    %v1105 = vmul.f32 %v1104, %v1102
    %v1106 = vmul.f32 %v1104, %v1103
    %v1107 = vadd.f32 %v1100, %v1105
    %v1108 = vadd.f32 %v1101, %v1106
    %v1109 = vld [vmem:[%s377 + $0x5] sm:$0xff]
    %v1110 = vld [vmem:[%s377 + $0xd] sm:$0xff]
    %v1111 = vstv %s471
    %v1112 = vmul.f32 %v1111, %v1109
    %v1113 = vmul.f32 %v1111, %v1110
    %v1114 = vadd.f32 %v1107, %v1112
    %v1115 = vadd.f32 %v1108, %v1113
    %v1116 = vld [vmem:[%s263 + $0x6] sm:$0xff]
    %v1117 = vld [vmem:[%s263 + $0xe] sm:$0xff]
    %v1118 = vstv %s472
    %v1119 = vmul.f32 %v1118, %v1116
    %v1120 = vmul.f32 %v1118, %v1117
    %v1121 = vadd.f32 %v1114, %v1119
    %v1122 = vadd.f32 %v1115, %v1120
    %v1123 = vld [vmem:[%s282 + $0x6] sm:$0xff]
    %v1124 = vld [vmem:[%s282 + $0xe] sm:$0xff]
    %v1125 = vstv %s473
    %v1126 = vmul.f32 %v1125, %v1123
    %v1127 = vmul.f32 %v1125, %v1124
    %v1128 = vadd.f32 %v1121, %v1126
    %v1129 = vadd.f32 %v1122, %v1127
    %v1130 = vld [vmem:[%s301 + $0x6] sm:$0xff]
    %v1131 = vld [vmem:[%s301 + $0xe] sm:$0xff]
    %v1132 = vstv %s474
    %v1133 = vmul.f32 %v1132, %v1130
    %v1134 = vmul.f32 %v1132, %v1131
    %v1135 = vadd.f32 %v1128, %v1133
    %v1136 = vadd.f32 %v1129, %v1134
    %v1137 = vld [vmem:[%s320 + $0x6] sm:$0xff]
    %v1138 = vld [vmem:[%s320 + $0xe] sm:$0xff]
    %v1139 = vstv %s475
    %v1140 = vmul.f32 %v1139, %v1137
    %v1141 = vmul.f32 %v1139, %v1138
    %v1142 = vadd.f32 %v1135, %v1140
    %v1143 = vadd.f32 %v1136, %v1141
    %v1144 = vld [vmem:[%s339 + $0x6] sm:$0xff]
    %v1145 = vld [vmem:[%s339 + $0xe] sm:$0xff]
    %v1146 = vstv %s476
    %v1147 = vmul.f32 %v1146, %v1144
    %v1148 = vmul.f32 %v1146, %v1145
    %v1149 = vadd.f32 %v1142, %v1147
    %v1150 = vadd.f32 %v1143, %v1148
    %v1151 = vld [vmem:[%s358 + $0x6] sm:$0xff]
    %v1152 = vld [vmem:[%s358 + $0xe] sm:$0xff]
    %v1153 = vstv %s477
    %v1154 = vmul.f32 %v1153, %v1151
    %v1155 = vmul.f32 %v1153, %v1152
    %v1156 = vadd.f32 %v1149, %v1154
    %v1157 = vadd.f32 %v1150, %v1155
    %v1158 = vld [vmem:[%s377 + $0x6] sm:$0xff]
    %v1159 = vld [vmem:[%s377 + $0xe] sm:$0xff]
    %v1160 = vstv %s478
    %v1161 = vmul.f32 %v1160, %v1158
    %v1162 = vmul.f32 %v1160, %v1159
    %v1163 = vadd.f32 %v1156, %v1161
    %v1164 = vadd.f32 %v1157, %v1162
    %v1165 = vsub.f32 0.0, %v1163
    %v1166 = vsub.f32 0.0, %v1164
    %v1167 = vmul.f32 %v1165, 1.442695
    %v1168 = vpow.pop %v1167
    %v1169 = vmul.f32 %v1166, 1.442695
    %v1170 = vpow.pop %v1169
    %v1171 = vadd.f32 %v1168, 1.0
    %v1172 = vadd.f32 %v1170, 1.0
    %v1173 = vrcp.pop %v1171
    %v1174 = vmul.f32 %v1171, %v1173
    %v1175 = vsub.f32 1.0, %v1174
    %v1176 = vmul.f32 %v1173, %v1175
    %v1177 = vadd.f32 %v1173, %v1176
    %vm1178 = vweird.f32 %v1171
    %vm1179 = vweird.f32 %v1173
    %vm1180 = vmor %vm1178, %vm1179
    %v1181 = vsel %vm1180, %v1173, %v1177
    %v1182 = vand.u32 2147483647, %v1171
    %vm1183 = vcmp.eq.f32.partialorder %v1182, 8.507059e+37
    %v1184 = vand.u32 %v1171, 2147483648
    %v1185 = vor.u32 1.1754944e-38, %v1184
    %v1186 = vsel %vm1183, %v1185, %v1181
    %v1187 = vrcp.pop %v1172
    %v1188 = vmul.f32 %v1172, %v1187
    %v1189 = vsub.f32 1.0, %v1188
    %v1190 = vmul.f32 %v1187, %v1189
    %v1191 = vadd.f32 %v1187, %v1190
    %vm1192 = vweird.f32 %v1172
    %vm1193 = vweird.f32 %v1187
    %vm1194 = vmor %vm1192, %vm1193
    %v1195 = vsel %vm1194, %v1187, %v1191
    %v1196 = vand.u32 2147483647, %v1172
    %vm1197 = vcmp.eq.f32.partialorder %v1196, 8.507059e+37
    %v1198 = vand.u32 %v1172, 2147483648
    %v1199 = vor.u32 1.1754944e-38, %v1198
    %v1200 = vsel %vm1197, %v1199, %v1195
    %1201 = vst.msk [vmem:[#allocation9] sm:$0xff] %vm141, %v1186
    %1202 = vst.msk [vmem:[#allocation9 + $0x8] sm:$0xff] %vm141, %v1200
    // Predicated region
    $region18: #{tpu_custom_call.1} parent=1 // pred_check
      _
    $region19: #{tpu_custom_call.1} parent=1 // pred_check_branch
      %1204 = sbr.rel (0) target = $region21
    $region20: #{tpu_custom_call.1} parent=1 // pred_region
      %1206 = vsyncadd [#allocation6], 0
      %s1207 = sshll.u32 [#allocation9], 4
      %s1208 = int_to_ptr.vmem [resolvable:$true] %s1207
      %s1209 = sshll.u32 %s2, 4
      %s1210 = int_to_ptr.hbm [resolvable:$true] %s1209
      %1215 = dma.vmem_to_hbm [thread:$0]  %s1208, 256, %s1210, [#allocation6], 128, 128, 8
    $region21: #{tpu_custom_call.1} parent=1 // pred_fallthru
      _
    // Predicated region
    $region22: #{tpu_custom_call.1} parent=1 // pred_check
      _
    $region23: #{tpu_custom_call.1} parent=1 // pred_check_branch
      %1217 = sbr.rel (0) target = $region25
    $region24: #{tpu_custom_call.1} parent=1 // pred_region
      %1219 = dma.done [#allocation6], 256
    $region25: #{tpu_custom_call.1} parent=1 // pred_fallthru
      _
    %1220 = vsyncpa [#allocation5], 1
    %1221 = vsyncpa [#allocation6], 1
    %1222 = vsyncpa [#allocation7], 1

</llo_original>
